<compile_context>
chip_gen: v5e
topology: v5e:2x2
jax: 0.10.0
libtpu: 0.0.40
codegen_flags: <defaults>
</compile_context>

<pallas_src>
import jax
import jax.numpy as jnp
from jax.experimental import pallas as pl
from jax.experimental.pallas import tpu as pltpu


def _time_encoder_kernel(t_ref, wb_ref, o_ref):
    # t_ref:  (1, TILE)    lane-dense timestamps
    # wb_ref: (C_pad, 2)   col 0 = weight, col 1 = bias (resident, zero-padded rows)
    # o_ref:  (TILE, C)
    t = t_ref[...]                      # (1, TILE) f32
    w = wb_ref[:, 0:1]                  # (C_pad, 1)
    b = wb_ref[:, 1:2]                  # (C_pad, 1)
    # Lane-dense compute: C on sublanes, N on lanes (all 128 lanes useful).
    res = jnp.cos(w * t + b)            # (C_pad, TILE) f32
    # XLU transpose back to the module's (N, C) layout just before the store.
    out = jnp.transpose(res)            # (TILE, C_pad)
    o_ref[...] = out[:, : o_ref.shape[-1]].astype(o_ref.dtype)


def time_encoder(t, weight, bias, *, tile_n=4096, out_dtype=jnp.float32):
    """TimeEncoder forward.

    t: any shape (flattened like torch .view(-1, 1)); weight: (C, 1); bias: (C,).
    Returns (t.size, C) with out[i, j] = cos(t_flat[i] * weight[j, 0] + bias[j]).
    """
    c = int(weight.shape[0])
    t_row = jnp.reshape(t, (1, -1)).astype(jnp.float32)        # (1, N) lane-major
    n = int(t_row.shape[1])
    if n == 0:
        return jnp.zeros((0, c), dtype=out_dtype)

    # Tile: always a multiple of 128 (ragged tail is clipped/masked by Pallas);
    # aim for >=4 grid steps when N allows it so the pipeline has work to
    # overlap and v7x can shard the "parallel" axis across its 2 TensorCores.
    tile_cap = max(128, (min(int(tile_n), 16384) // 128) * 128)
    quarter = -(-n // 4)
    tile = min(tile_cap, max(128, ((quarter + 127) // 128) * 128))
    grid = -(-n // tile)

    # Fused resident parameter block, C padded to a sublane multiple of 8:
    # column 0 = weight, column 1 = bias.
    c_pad = ((c + 7) // 8) * 8
    wb = jnp.zeros((c_pad, 2), jnp.float32)
    wb = wb.at[:c, 0].set(jnp.reshape(weight.astype(jnp.float32), (c,)))
    wb = wb.at[:c, 1].set(jnp.reshape(bias.astype(jnp.float32), (c,)))

    # VMEM per grid step: out block (tile*128*4) x2 buffers, input block
    # (8*tile*4, sublane-padded) x2, plus compiler temps for the (C_pad, TILE)
    # intermediate and its transpose (generously ~tile*128*4 x2).  Only ever
    # RAISE the scoped limit above the platform defaults (16 MiB v5e /
    # 32 MiB v6e,v7x) and keep headroom under v7x's 64 MiB physical VMEM.
    vmem_needed = tile * (2 * 128 * 4 + 2 * 8 * 4 + 2 * 128 * 4) + (1 << 20)
    vmem_limit = int(min(max(vmem_needed, 32 << 20), 44 << 20))

    cost = pl.CostEstimate(
        flops=2 * n * c,                 # mul + add per output element
        transcendentals=n * c,           # one cos per output element
        bytes_accessed=4 * n + 4 * n * c + 4 * c_pad * 2,
    )

    out = pl.pallas_call(
        _time_encoder_kernel,
        out_shape=jax.ShapeDtypeStruct((n, c), out_dtype),
        grid_spec=pltpu.PrefetchScalarGridSpec(
            num_scalar_prefetch=0,
            grid=(grid,),
            in_specs=[
                pl.BlockSpec((1, tile), lambda i: (0, i)),     # lane-dense t
                pl.BlockSpec((c_pad, 2), lambda i: (0, 0)),    # resident weight/bias
            ],
            out_specs=pl.BlockSpec((tile, c), lambda i: (i, 0)),
        ),
        compiler_params=pltpu.CompilerParams(
            dimension_semantics=("parallel",),
            vmem_limit_bytes=vmem_limit,
        ),
        cost_estimate=cost,
    )(t_row, wb)

    return out


if __name__ == "__main__":
    out_channels = 50  # per the module docstring ("设置out_channel为50")

    key = jax.random.PRNGKey(0)
    k_t, k_w, k_b = jax.random.split(key, 3)

    # torch.nn.Linear(1, C) init: fan_in = 1 -> weight, bias ~ U(-1, 1)
    weight = jax.random.uniform(k_w, (out_channels, 1), jnp.float32, -1.0, 1.0)
    bias = jax.random.uniform(k_b, (out_channels,), jnp.float32, -1.0, 1.0)

    # N = 1000 (not a multiple of 8 or 128) exercises the ragged last block.
    t = jax.random.uniform(k_t, (25, 40), jnp.float32, 0.0, 100.0)
    ref = jnp.cos(jnp.reshape(t, (-1, 1)) @ weight.T + bias[None, :])

    # 1) Default tiling: N=1000 -> tile=256, grid=4, masked ragged tail.
    out1 = time_encoder(t, weight, bias)
    jax.block_until_ready(out1)
    assert out1.shape == (t.size, out_channels)
    assert jnp.allclose(out1, ref, atol=1e-5, rtol=1e-5)

    # 2) Tiny input smaller than one 128-lane tile (single clipped block).
    t_small = jax.random.uniform(k_t, (7, 9), jnp.float32, 0.0, 100.0)
    ref_small = jnp.cos(jnp.reshape(t_small, (-1, 1)) @ weight.T + bias[None, :])
    out2 = time_encoder(t_small, weight, bias)
    jax.block_until_ready(out2)
    assert out2.shape == (t_small.size, out_channels)
    assert jnp.allclose(out2, ref_small, atol=1e-5, rtol=1e-5)

    # 3) Capped tile path: N=2500 with tile_n=512 -> tile=512, grid=5, ragged tail.
    t_mid = jax.random.uniform(k_t, (50, 50), jnp.float32, 0.0, 100.0)
    ref_mid = jnp.cos(jnp.reshape(t_mid, (-1, 1)) @ weight.T + bias[None, :])
    out3 = time_encoder(t_mid, weight, bias, tile_n=512)
    jax.block_until_ready(out3)
    assert out3.shape == (t_mid.size, out_channels)
    assert jnp.allclose(out3, ref_mid, atol=1e-5, rtol=1e-5)

    print("KERNEL_OK")
</pallas_src>

<mosaic_0001>
module attributes {stable_mosaic.version = 11 : i64} {
  func.func @_time_encoder_kernel(%arg0: i32, %arg1: memref<1x256xf32, #tpu.memory_space<vmem>>, %arg2: memref<56x2xf32, #tpu.memory_space<vmem>>, %arg3: memref<256x50xf32, #tpu.memory_space<vmem>>) attributes {dimension_semantics = [#tpu.dimension_semantics<parallel>], iteration_bounds = array<i64: 4>, scalar_prefetch = 0 : i64, scratch_operands = 0 : i64, tpu.core_type = #tpu.core_type<tc>, window_params = [{transform_indices = @transform_0, window_bounds = array<i64: 1, 256>}, {pipeline_mode = #tpu.pipeline_mode<synchronous>, transform_indices = @transform_1, window_bounds = array<i64: 56, 2>}, {transform_indices = @transform_2, window_bounds = array<i64: 256, 50>}]} {
    %c0 = arith.constant 0 : index
    %c0_0 = arith.constant 0 : index
    %0 = vector.load %arg1[%c0, %c0_0] : memref<1x256xf32, #tpu.memory_space<vmem>>, vector<1x256xf32>
    %c0_1 = arith.constant 0 : index
    %c0_2 = arith.constant 0 : index
    %1 = vector.load %arg2[%c0_1, %c0_2] : memref<56x2xf32, #tpu.memory_space<vmem>>, vector<56x1xf32>
    %c0_3 = arith.constant 0 : index
    %c1 = arith.constant 1 : index
    %2 = vector.load %arg2[%c0_3, %c1] : memref<56x2xf32, #tpu.memory_space<vmem>>, vector<56x1xf32>
    %3 = vector.broadcast %1 : vector<56x1xf32> to vector<56x256xf32>
    %4 = vector.broadcast %0 : vector<1x256xf32> to vector<56x256xf32>
    %5 = arith.mulf %3, %4 : vector<56x256xf32>
    %6 = vector.broadcast %2 : vector<56x1xf32> to vector<56x256xf32>
    %7 = arith.addf %5, %6 : vector<56x256xf32>
    %8 = math.cos %7 : vector<56x256xf32>
    %9 = tpu.transpose %8, [1, 0] : vector<56x256xf32> -> vector<256x56xf32>
    %10 = vector.extract_strided_slice %9 {offsets = [0, 0], sizes = [256, 50], strides = [1, 1]} : vector<256x56xf32> to vector<256x50xf32>
    %c0_4 = arith.constant 0 : index
    %c0_5 = arith.constant 0 : index
    %11 = vector.load %arg3[%c0_4, %c0_5] : memref<256x50xf32, #tpu.memory_space<vmem>>, vector<256x50xf32>
    tpu.vector_store %arg3[%c0_4, %c0_5], %10 {strides = array<i32>} : memref<256x50xf32, #tpu.memory_space<vmem>>, vector<256x50xf32>,
    return
  }
  func.func @transform_0(%arg0: i32) -> (i32, i32) {
    %c0_i32 = arith.constant 0 : i32
    %c0_i32_0 = arith.constant 0 : i32
    return %c0_i32, %arg0 : i32, i32
  }
  func.func @transform_1(%arg0: i32) -> (i32, i32) {
    %c0_i32 = arith.constant 0 : i32
    %c0_i32_0 = arith.constant 0 : i32
    %c0_i32_1 = arith.constant 0 : i32
    return %c0_i32, %c0_i32_0 : i32, i32
  }
  func.func @transform_2(%arg0: i32) -> (i32, i32) {
    %c0_i32 = arith.constant 0 : i32
    %c0_i32_0 = arith.constant 0 : i32
    return %arg0, %c0_i32 : i32, i32
  }
}

</mosaic_0001>

<llo_original>
// kernel: tpu_custom_call.1
$region0: #{tpu_custom_call.1}
  #allocation0 [shape = 'u32[]', space=smem, size = 0x4, offset = 0x4, fixed_abs, tag = 'smem constant byte address 0x4 - core index']
  #allocation1 [shape = 'u32[72,128]{1,0:T(1,128)}', space=vmem, size = 0x9000, scoped, tag = 'internal scratch']
  %s0 = inlined_call_operand.vmem [shape: f32[1,1000], index: 0, kind: input, shape index: {}]
  %s1 = inlined_call_operand.vmem [shape: f32[56,2], index: 1, kind: input, shape index: {}]
  %s2 = inlined_call_operand.vmem [shape: f32[1000,50], index: 2, kind: output, shape index: {}]
  %s3 = sld [smem:[#allocation0]]
  $region89: #{tpu_custom_call.1} parent=0
    _
  %s5 = ssub.s32 1, %s3
  %s6 = scalar_select 0, %s5, %s3
  $region1: #{tpu_custom_call.1} parent=0
    #allocation2 [shape = 'u8[262144]{0}', space=vmem, size = 0x40000, scoped, tag = 'output window, operand 0']
    loop: start=0, step=1, limit=6
    $region2: #{tpu_custom_call.1} parent=1 // loop_pre_header
      _
    $region3: #{tpu_custom_call.1} parent=1 // loop_header
      %s8 = sphi 0, %s12
      %p9 = scmp.ge.s32.totalorder %s8, 6
      %s18 = sphi 0, %s20
      %s21 = sphi 0, %s18
      %s22 = sphi 0, %s21
      %s38 = sphi 0, %s22
      %s42 = sphi 0, %s42
      %s44 = sphi 0, %s42
      %s45 = sphi 0, %s44
      %s59 = sphi 0, %s45
      %s65 = sphi 0, %s67
      %s68 = sphi 0, %s65
      %s69 = sphi 0, %s68
      %s85 = sphi 0, %s69
    $region4: #{tpu_custom_call.1} parent=1 // loop_header_branch
      %11 = sbr.rel (%p9) target = $region8
    $region5: #{tpu_custom_call.1} parent=1 // loop_body
      %s13 = ssub.s32 %s8, 1
      %s14 = ssub.s32 %s8, 2
      %s15 = sadd.s32 %s8, 1
      %s16 = ssub.s32 %s8, %s15
      %p17 = scmp.eq.s32.totalorder %s16, 0
      %s19 = sadd.s32 %s18, 1
      %s20 = scalar_select %p17, %s18, %s19
      %p23 = pneg %p17
      %p24 = scmp.eq.s32.totalorder %s8, 3
      %p25 = por %p23, %p24
      %p26 = scmp.ne.s32.totalorder %s18, %s21
      %p27 = scmp.eq.s32.totalorder %s8, 0
      %p28 = por %p26, %p27
      %p29 = scmp.ne.s32.totalorder %s18, %s21
      %p30 = scmp.eq.s32.totalorder %s13, 3
      %p31 = por %p29, %p30
      %p32 = scmp.ne.s32.totalorder %s21, %s22
      %p33 = scmp.eq.s32.totalorder %s13, 0
      %p34 = por %p32, %p33
      %p35 = scmp.ne.s32.totalorder %s21, %s22
      %p36 = scmp.eq.s32.totalorder %s14, 3
      %p37 = por %p35, %p36
      %p39 = scmp.ne.s32.totalorder %s22, %s38
      %p40 = scmp.eq.s32.totalorder %s14, 0
      %p41 = por %p39, %p40
      %s43 = sadd.s32 %s42, 1
      %p46 = scmp.eq.s32.totalorder %s8, 3
      %p47 = scmp.ne.s32.totalorder %s42, %s44
      %p48 = scmp.eq.s32.totalorder %s8, 0
      %p49 = por %p47, %p48
      %p50 = scmp.ne.s32.totalorder %s42, %s44
      %p51 = scmp.eq.s32.totalorder %s13, 3
      %p52 = por %p50, %p51
      %p53 = scmp.ne.s32.totalorder %s44, %s45
      %p54 = scmp.eq.s32.totalorder %s13, 0
      %p55 = por %p53, %p54
      %p56 = scmp.ne.s32.totalorder %s44, %s45
      %p57 = scmp.eq.s32.totalorder %s14, 3
      %p58 = por %p56, %p57
      %p60 = scmp.ne.s32.totalorder %s45, %s59
      %p61 = scmp.eq.s32.totalorder %s14, 0
      %p62 = por %p60, %p61
      %s63 = ssub.s32 %s8, %s15
      %p64 = scmp.eq.s32.totalorder %s63, 0
      %s66 = sadd.s32 %s65, 1
      %s67 = scalar_select %p64, %s65, %s66
      %p70 = pneg %p64
      %p71 = scmp.eq.s32.totalorder %s8, 3
      %p72 = por %p70, %p71
      %p73 = scmp.ne.s32.totalorder %s65, %s68
      %p74 = scmp.eq.s32.totalorder %s8, 0
      %p75 = por %p73, %p74
      %p76 = scmp.ne.s32.totalorder %s65, %s68
      %p77 = scmp.eq.s32.totalorder %s13, 3
      %p78 = por %p76, %p77
      %p79 = scmp.ne.s32.totalorder %s68, %s69
      %p80 = scmp.eq.s32.totalorder %s13, 0
      %p81 = por %p79, %p80
      %p82 = scmp.ne.s32.totalorder %s68, %s69
      %p83 = scmp.eq.s32.totalorder %s14, 3
      %p84 = por %p82, %p83
      %p86 = scmp.ne.s32.totalorder %s69, %s85
      %p87 = scmp.eq.s32.totalorder %s14, 0
      %p88 = por %p86, %p87
      %p89 = scmp.le.s32.totalorder 1, %s8
      %p90 = scmp.lt.s32.totalorder %s8, 5
      %p91 = pnand %p89, %p90
      %p92 = pneg %p91
      // Predicated region
      $region9: #{tpu_custom_call.1} parent=5 // pred_check
        _
      $region10: #{tpu_custom_call.1} parent=5 // pred_check_branch
        %94 = sbr.rel (%p91) target = $region12
      $region11: #{tpu_custom_call.1} parent=5 // pred_region
        %s95 = ssub.s32 %s8, 1
        // Predicated region
        $region13: #{tpu_custom_call.1} parent=11 // pred_check
          %p96 = pneg %p55
        $region14: #{tpu_custom_call.1} parent=11 // pred_check_branch
          %98 = sbr.rel (%p96) target = $region16
        $region15: #{tpu_custom_call.1} parent=11 // pred_region
          _
        $region16: #{tpu_custom_call.1} parent=11 // pred_fallthru
          _
      $region12: #{tpu_custom_call.1} parent=5 // pred_fallthru
        _
      %p99 = scmp.lt.s32.totalorder %s8, 4
      // Predicated region
      $region17: #{tpu_custom_call.1} parent=5 // pred_check
        %p100 = pneg %p99
      $region18: #{tpu_custom_call.1} parent=5 // pred_check_branch
        %102 = sbr.rel (%p100) target = $region20
      $region19: #{tpu_custom_call.1} parent=5 // pred_region
        // Predicated region
        $region21: #{tpu_custom_call.1} parent=19 // pred_check
          %p103 = pneg %p28
        $region22: #{tpu_custom_call.1} parent=19 // pred_check_branch
          %105 = sbr.rel (%p103) target = $region24
        $region23: #{tpu_custom_call.1} parent=19 // pred_region
          %s106 = smul.u32 2, %s8
          %p107 = scmp.lt.s32.totalorder %s106, 7
          %s108 = scalar_select %p107, %s106, 7
          %s109 = scalar_lea.vmem %s0, %s108
          %s110 = smul.u32 2, %s8
        $region24: #{tpu_custom_call.1} parent=19 // pred_fallthru
          _
      $region20: #{tpu_custom_call.1} parent=5 // pred_fallthru
        _
      %p111 = scmp.le.s32.totalorder 1, %s8
      %p112 = scmp.lt.s32.totalorder %s8, 5
      %p113 = pnand %p111, %p112
      %p114 = pneg %p113
      // Predicated region
      $region25: #{tpu_custom_call.1} parent=5 // pred_check
        _
      $region26: #{tpu_custom_call.1} parent=5 // pred_check_branch
        %116 = sbr.rel (%p113) target = $region28
      $region27: #{tpu_custom_call.1} parent=5 // pred_region
        %s117 = ssub.s32 %s8, 1
        %s118 = smul.u32 2, %s13
        %p119 = scmp.lt.s32.totalorder %s118, 7
        %s120 = scalar_select %p119, %s118, 7
        %s121 = scalar_lea.vmem %s0, %s120
        %p122 = pneg %p34
        %p123 = pneg %p31
        %p124 = pneg %p55
        %p125 = pneg %p52
        %p126 = pneg %p81
        %p127 = pneg %p78
        %s128 = sand.u32 %s68, 1
        %s129 = sand.u32 %s68, 1
        %s130 = smul.addr %s129, 256
        %s131 = scalar_lea.vmem [#allocation2], %s130
        %s132 = smul.u32 2, %s13
        %p133 = scmp.lt.s32.totalorder %s132, 7
        %s134 = scalar_select %p133, %s132, 7
        %s135 = scalar_lea.vmem %s0, %s134
        %s136 = smul.u32 2, %s13
        %s137 = smul.u32 32, %s13
        %s138 = ssub.s32 125, %s137
        %p139 = scmp.lt.s32.totalorder %s138, 32
        %s140 = scalar_select %p139, %s138, 32
        %s141 = smul.u32 8, %s140
        %v142 = vld [vmem:[%s135] sm:$0x3]
        %v143 = vld [vmem:[%s1] sm:$0xff]
        %v144 = vld [vmem:[%s1 + $0x8] sm:$0xff]
        %v145 = vld [vmem:[%s1 + $0x10] sm:$0xff]
        %v146 = vld [vmem:[%s1 + $0x18] sm:$0xff]
        %v147 = vld [vmem:[%s1 + $0x20] sm:$0xff]
        %v148 = vld [vmem:[%s1 + $0x28] sm:$0xff]
        %v149 = vld [vmem:[%s1 + $0x30] sm:$0xff]
        %151 = vset.pattern.permute.xlu0 0
        %152 = vperm.xlu0 %151, %v143
        %v153 = vpop.permute.xlu0 %152
        %156 = vset.pattern.permute.xlu0 0
        %157 = vperm.xlu0 %156, %v144
        %v158 = vpop.permute.xlu0 %157
        %161 = vset.pattern.permute.xlu0 0
        %162 = vperm.xlu0 %161, %v145
        %v163 = vpop.permute.xlu0 %162
        %166 = vset.pattern.permute.xlu0 0
        %167 = vperm.xlu0 %166, %v146
        %v168 = vpop.permute.xlu0 %167
        %171 = vset.pattern.permute.xlu0 0
        %172 = vperm.xlu0 %171, %v147
        %v173 = vpop.permute.xlu0 %172
        %176 = vset.pattern.permute.xlu0 0
        %177 = vperm.xlu0 %176, %v148
        %v178 = vpop.permute.xlu0 %177
        %181 = vset.pattern.permute.xlu0 0
        %182 = vperm.xlu0 %181, %v149
        %v183 = vpop.permute.xlu0 %182
        %v186 = vperm.slane %v142, 0
        %v187 = vperm.slane %v142, 1
        %v190 = vmul.f32 %v153, %v186
        %v191 = vmul.f32 %v153, %v187
        %v192 = vmul.f32 %v158, %v186
        %v193 = vmul.f32 %v158, %v187
        %v194 = vmul.f32 %v163, %v186
        %v195 = vmul.f32 %v163, %v187
        %v196 = vmul.f32 %v168, %v186
        %v197 = vmul.f32 %v168, %v187
        %v198 = vmul.f32 %v173, %v186
        %v199 = vmul.f32 %v173, %v187
        %v200 = vmul.f32 %v178, %v186
        %v201 = vmul.f32 %v178, %v187
        %v202 = vmul.f32 %v183, %v186
        %v203 = vmul.f32 %v183, %v187
        %204 = vset.pattern.permute.xlu0 1
        %205 = vperm.xlu0 %204, %v143
        %v206 = vpop.permute.xlu0 %205
        %208 = vset.pattern.permute.xlu0 1
        %209 = vperm.xlu0 %208, %v144
        %v210 = vpop.permute.xlu0 %209
        %212 = vset.pattern.permute.xlu0 1
        %213 = vperm.xlu0 %212, %v145
        %v214 = vpop.permute.xlu0 %213
        %216 = vset.pattern.permute.xlu0 1
        %217 = vperm.xlu0 %216, %v146
        %v218 = vpop.permute.xlu0 %217
        %220 = vset.pattern.permute.xlu0 1
        %221 = vperm.xlu0 %220, %v147
        %v222 = vpop.permute.xlu0 %221
        %224 = vset.pattern.permute.xlu0 1
        %225 = vperm.xlu0 %224, %v148
        %v226 = vpop.permute.xlu0 %225
        %228 = vset.pattern.permute.xlu0 1
        %229 = vperm.xlu0 %228, %v149
        %v230 = vpop.permute.xlu0 %229
        %v232 = vadd.f32 %v190, %v206
        %v233 = vadd.f32 %v191, %v206
        %v234 = vadd.f32 %v192, %v210
        %v235 = vadd.f32 %v193, %v210
        %v236 = vadd.f32 %v194, %v214
        %v237 = vadd.f32 %v195, %v214
        %v238 = vadd.f32 %v196, %v218
        %v239 = vadd.f32 %v197, %v218
        %v240 = vadd.f32 %v198, %v222
        %v241 = vadd.f32 %v199, %v222
        %v242 = vadd.f32 %v200, %v226
        %v243 = vadd.f32 %v201, %v226
        %v244 = vadd.f32 %v202, %v230
        %v245 = vadd.f32 %v203, %v230
        %v246 = vand.u32 2147483647, %v232
        %vm247 = vcmp.le.f32.partialorder %v246, 0.7853982
        %vm248 = vcmp.lt.s32.totalorder %v232, 0
        %v249 = vand.u32 %v232, 2139095040
        %v250 = vshrl.u32 %v249, 23
        %v251 = vsub.s32 %v250, 127
        %v252 = vand.u32 2147483647, %v232
        %v253 = vand.u32 %v252, 8388607
        %v254 = vor.u32 %v253, 8388608
        %v255 = vsub.s32 0, %v254
        %v256 = vadd.s32 %v251, 1
        %vm257 = vcmp.gt.s32.totalorder %v256, 0
        %v258 = vsel %vm257, %v256, 0
        %v259 = vshrl.u32 %v258, 5
        %v260 = vand.u32 %v258, 31
        %v261 = vsub.s32 32, %v260
        %v262 = vshrl.u32 683565275, %v261
        %v263 = vshll.u32 683565275, %v260
        %v264 = vshrl.u32 2475754826, %v261
        %v265 = vor.u32 %v263, %v264
        %v266 = vshll.u32 2475754826, %v260
        %v267 = vshrl.u32 2131351028, %v261
        %v268 = vor.u32 %v266, %v267
        %v269 = vshll.u32 2131351028, %v260
        %v270 = vshrl.u32 2102212464, %v261
        %v271 = vor.u32 %v269, %v270
        %v272 = vshll.u32 2102212464, %v260
        %v273 = vshrl.u32 920167782, %v261
        %v274 = vor.u32 %v272, %v273
        %v275 = vshll.u32 920167782, %v260
        %v276 = vshrl.u32 1326507024, %v261
        %v277 = vor.u32 %v275, %v276
        %vm278 = vcmp.lt.s32.totalorder %v259, 1
        %vm279 = vcmp.lt.s32.totalorder %v259, 2
        %vm280 = vcmp.lt.s32.totalorder %v259, 3
        %vm281 = vcmp.lt.s32.totalorder %v259, 4
        %v282 = vsel %vm278, %v262, %v265
        %v283 = vsel %vm281, %v271, 2102212464
        %v284 = vsel %vm280, %v268, %v283
        %v285 = vsel %vm279, %v282, %v284
        %v286 = vsel %vm278, %v265, %v268
        %v287 = vsel %vm281, %v274, 920167782
        %v288 = vsel %vm280, %v271, %v287
        %v289 = vsel %vm279, %v286, %v288
        %v290 = vsel %vm278, %v268, %v271
        %v291 = vsel %vm281, %v277, 1326507024
        %v292 = vsel %vm280, %v274, %v291
        %v293 = vsel %vm279, %v290, %v292
        %v294 = vshll.u32 %v254, 8
        %v295 = vand.u32 %v294, 65535
        %v296 = vshrl.u32 %v294, 16
        %v297 = vand.u32 %v293, 65535
        %v298 = vshrl.u32 %v293, 16
        %v299 = vmul.u32 %v295, %v297
        %v300 = vmul.u32 %v295, %v298
        %v301 = vmul.u32 %v296, %v297
        %v302 = vmul.u32 %v296, %v298
        %v303 = vshll.u32 %v300, 16
        %v304 = vshrl.u32 %v300, 16
        %v305 = vshll.u32 %v301, 16
        %v306 = vshrl.u32 %v301, 16
        %vm307 = vc.u32 %v299, %v303
        %v308 = vsel %vm307, 1, 0
        %v309 = vadd.s32 %v299, %v303
        %v310 = vadd.s32 %v302, %v308
        %vm311 = vc.u32 %v309, %v305
        %v312 = vsel %vm311, 1, 0
        %v313 = vadd.s32 %v309, %v305
        %v314 = vadd.s32 %v310, %v312
        %v315 = vadd.s32 %v314, %v304
        %v316 = vadd.s32 %v315, %v306
        %v317 = vand.u32 %v294, 65535
        %v318 = vshrl.u32 %v294, 16
        %v319 = vand.u32 %v289, 65535
        %v320 = vshrl.u32 %v289, 16
        %v321 = vmul.u32 %v317, %v319
        %v322 = vmul.u32 %v317, %v320
        %v323 = vmul.u32 %v318, %v319
        %v324 = vmul.u32 %v318, %v320
        %v325 = vshll.u32 %v322, 16
        %v326 = vshrl.u32 %v322, 16
        %v327 = vshll.u32 %v323, 16
        %v328 = vshrl.u32 %v323, 16
        %vm329 = vc.u32 %v321, %v325
        %v330 = vsel %vm329, 1, 0
        %v331 = vadd.s32 %v321, %v325
        %v332 = vadd.s32 %v324, %v330
        %vm333 = vc.u32 %v331, %v327
        %v334 = vsel %vm333, 1, 0
        %v335 = vadd.s32 %v331, %v327
        %v336 = vadd.s32 %v332, %v334
        %v337 = vadd.s32 %v336, %v326
        %v338 = vadd.s32 %v337, %v328
        %v339 = vmul.u32 %v294, %v285
        %v340 = vadd.s32 %v316, %v335
        %vm341 = vc.u32 %v316, %v335
        %v342 = vadd.s32 %v338, 1
        %v343 = vsel %vm341, %v342, %v338
        %v344 = vadd.s32 %v339, %v343
        %v345 = vadd.s32 %v344, 536870912
        %v346 = vshrl.u32 %v345, 30
        %v347 = vshll.u32 %v346, 30
        %v348 = vsub.s32 %v344, %v347
        %vm349 = vcmp.lt.s32.totalorder %v348, 0
        %v350 = vsub.s32 0, %v348
        %v351 = vsel %vm349, %v350, %v348
        %v352 = vclz %v351
        %v353 = vsub.s32 %v352, 2
        %vm354 = vcmp.gt.s32.totalorder 0, %v353
        %v355 = vsel %vm354, 0, %v353
        %v356 = vsub.s32 32, %v355
        %v357 = vshll.u32 %v348, %v355
        %v358 = vshrl.u32 %v340, %v356
        %v359 = vor.u32 %v357, %v358
        %v360 = vsub.s32 4294967266, %v355
        %v361 = vadd.s32 %v360, 127
        %v362 = vshll.u32 %v361, 23
        %v363 = vor.u32 4788187, %v362
        %v364 = vand.u32 2147483647, %v363
        %v366 = vcvt.s32.f32 %v359
        %v367 = vmul.f32 %v366, %v364
        %v368 = vxor.u32 %v367, 2147483648
        %v369 = vsel %vm248, %v368, %v367
        %v370 = vsub.s32 4, %v346
        %v371 = vsel %vm248, %v370, %v346
        %v372 = vsel %vm247, %v232, %v369
        %v373 = vsel %vm247, 0, %v371
        %v374 = vmul.f32 %v372, %v372
        %v375 = vmul.f32 %v374, -0.001358992
        %v376 = vadd.f32 %v375, 0.041655596
        %v377 = vmul.f32 %v374, %v376
        %v378 = vadd.f32 %v377, -0.4999988
        %v379 = vmul.f32 %v374, %v378
        %v380 = vadd.f32 1.0, %v379
        %v381 = vmul.f32 %v372, %v372
        %v382 = vmul.f32 %v381, -0.00019511016
        %v383 = vadd.f32 %v382, 0.008332121
        %v384 = vmul.f32 %v381, %v383
        %v385 = vadd.f32 %v384, -0.16666654
        %v386 = vmul.f32 %v381, %v385
        %v387 = vadd.f32 %v386, 1.0
        %v388 = vmul.f32 %v387, %v372
        %vm389 = vweird.f32 %v232
        %v390 = vand.u32 %v373, 3
        %vm391 = vcmp.lt.s32.totalorder %v390, 2
        %vm392 = vcmp.eq.s32.totalorder %v390, 0
        %v393 = vxor.u32 %v388, 2147483648
        %v394 = vsel %vm392, %v380, %v393
        %vm395 = vcmp.eq.s32.totalorder %v390, 2
        %v396 = vxor.u32 %v380, 2147483648
        %v397 = vsel %vm395, %v396, %v388
        %v398 = vsel %vm391, %v394, %v397
        %v399 = vsel %vm389, nan, %v398
        %v400 = vand.u32 2147483647, %v233
        %vm401 = vcmp.le.f32.partialorder %v400, 0.7853982
        %vm402 = vcmp.lt.s32.totalorder %v233, 0
        %v403 = vand.u32 %v233, 2139095040
        %v404 = vshrl.u32 %v403, 23
        %v405 = vsub.s32 %v404, 127
        %v406 = vand.u32 2147483647, %v233
        %v407 = vand.u32 %v406, 8388607
        %v408 = vor.u32 %v407, 8388608
        %v409 = vsub.s32 0, %v408
        %v410 = vadd.s32 %v405, 1
        %vm411 = vcmp.gt.s32.totalorder %v410, 0
        %v412 = vsel %vm411, %v410, 0
        %v413 = vshrl.u32 %v412, 5
        %v414 = vand.u32 %v412, 31
        %v415 = vsub.s32 32, %v414
        %v416 = vshrl.u32 683565275, %v415
        %v417 = vshll.u32 683565275, %v414
        %v418 = vshrl.u32 2475754826, %v415
        %v419 = vor.u32 %v417, %v418
        %v420 = vshll.u32 2475754826, %v414
        %v421 = vshrl.u32 2131351028, %v415
        %v422 = vor.u32 %v420, %v421
        %v423 = vshll.u32 2131351028, %v414
        %v424 = vshrl.u32 2102212464, %v415
        %v425 = vor.u32 %v423, %v424
        %v426 = vshll.u32 2102212464, %v414
        %v427 = vshrl.u32 920167782, %v415
        %v428 = vor.u32 %v426, %v427
        %v429 = vshll.u32 920167782, %v414
        %v430 = vshrl.u32 1326507024, %v415
        %v431 = vor.u32 %v429, %v430
        %vm432 = vcmp.lt.s32.totalorder %v413, 1
        %vm433 = vcmp.lt.s32.totalorder %v413, 2
        %vm434 = vcmp.lt.s32.totalorder %v413, 3
        %vm435 = vcmp.lt.s32.totalorder %v413, 4
        %v436 = vsel %vm432, %v416, %v419
        %v437 = vsel %vm435, %v425, 2102212464
        %v438 = vsel %vm434, %v422, %v437
        %v439 = vsel %vm433, %v436, %v438
        %v440 = vsel %vm432, %v419, %v422
        %v441 = vsel %vm435, %v428, 920167782
        %v442 = vsel %vm434, %v425, %v441
        %v443 = vsel %vm433, %v440, %v442
        %v444 = vsel %vm432, %v422, %v425
        %v445 = vsel %vm435, %v431, 1326507024
        %v446 = vsel %vm434, %v428, %v445
        %v447 = vsel %vm433, %v444, %v446
        %v448 = vshll.u32 %v408, 8
        %v449 = vand.u32 %v448, 65535
        %v450 = vshrl.u32 %v448, 16
        %v451 = vand.u32 %v447, 65535
        %v452 = vshrl.u32 %v447, 16
        %v453 = vmul.u32 %v449, %v451
        %v454 = vmul.u32 %v449, %v452
        %v455 = vmul.u32 %v450, %v451
        %v456 = vmul.u32 %v450, %v452
        %v457 = vshll.u32 %v454, 16
        %v458 = vshrl.u32 %v454, 16
        %v459 = vshll.u32 %v455, 16
        %v460 = vshrl.u32 %v455, 16
        %vm461 = vc.u32 %v453, %v457
        %v462 = vsel %vm461, 1, 0
        %v463 = vadd.s32 %v453, %v457
        %v464 = vadd.s32 %v456, %v462
        %vm465 = vc.u32 %v463, %v459
        %v466 = vsel %vm465, 1, 0
        %v467 = vadd.s32 %v463, %v459
        %v468 = vadd.s32 %v464, %v466
        %v469 = vadd.s32 %v468, %v458
        %v470 = vadd.s32 %v469, %v460
        %v471 = vand.u32 %v448, 65535
        %v472 = vshrl.u32 %v448, 16
        %v473 = vand.u32 %v443, 65535
        %v474 = vshrl.u32 %v443, 16
        %v475 = vmul.u32 %v471, %v473
        %v476 = vmul.u32 %v471, %v474
        %v477 = vmul.u32 %v472, %v473
        %v478 = vmul.u32 %v472, %v474
        %v479 = vshll.u32 %v476, 16
        %v480 = vshrl.u32 %v476, 16
        %v481 = vshll.u32 %v477, 16
        %v482 = vshrl.u32 %v477, 16
        %vm483 = vc.u32 %v475, %v479
        %v484 = vsel %vm483, 1, 0
        %v485 = vadd.s32 %v475, %v479
        %v486 = vadd.s32 %v478, %v484
        %vm487 = vc.u32 %v485, %v481
        %v488 = vsel %vm487, 1, 0
        %v489 = vadd.s32 %v485, %v481
        %v490 = vadd.s32 %v486, %v488
        %v491 = vadd.s32 %v490, %v480
        %v492 = vadd.s32 %v491, %v482
        %v493 = vmul.u32 %v448, %v439
        %v494 = vadd.s32 %v470, %v489
        %vm495 = vc.u32 %v470, %v489
        %v496 = vadd.s32 %v492, 1
        %v497 = vsel %vm495, %v496, %v492
        %v498 = vadd.s32 %v493, %v497
        %v499 = vadd.s32 %v498, 536870912
        %v500 = vshrl.u32 %v499, 30
        %v501 = vshll.u32 %v500, 30
        %v502 = vsub.s32 %v498, %v501
        %vm503 = vcmp.lt.s32.totalorder %v502, 0
        %v504 = vsub.s32 0, %v502
        %v505 = vsel %vm503, %v504, %v502
        %v506 = vclz %v505
        %v507 = vsub.s32 %v506, 2
        %vm508 = vcmp.gt.s32.totalorder 0, %v507
        %v509 = vsel %vm508, 0, %v507
        %v510 = vsub.s32 32, %v509
        %v511 = vshll.u32 %v502, %v509
        %v512 = vshrl.u32 %v494, %v510
        %v513 = vor.u32 %v511, %v512
        %v514 = vsub.s32 4294967266, %v509
        %v515 = vadd.s32 %v514, 127
        %v516 = vshll.u32 %v515, 23
        %v517 = vor.u32 4788187, %v516
        %v518 = vand.u32 2147483647, %v517
        %v520 = vcvt.s32.f32 %v513
        %v521 = vmul.f32 %v520, %v518
        %v522 = vxor.u32 %v521, 2147483648
        %v523 = vsel %vm402, %v522, %v521
        %v524 = vsub.s32 4, %v500
        %v525 = vsel %vm402, %v524, %v500
        %v526 = vsel %vm401, %v233, %v523
        %v527 = vsel %vm401, 0, %v525
        %v528 = vmul.f32 %v526, %v526
        %v529 = vmul.f32 %v528, -0.001358992
        %v530 = vadd.f32 %v529, 0.041655596
        %v531 = vmul.f32 %v528, %v530
        %v532 = vadd.f32 %v531, -0.4999988
        %v533 = vmul.f32 %v528, %v532
        %v534 = vadd.f32 1.0, %v533
        %v535 = vmul.f32 %v526, %v526
        %v536 = vmul.f32 %v535, -0.00019511016
        %v537 = vadd.f32 %v536, 0.008332121
        %v538 = vmul.f32 %v535, %v537
        %v539 = vadd.f32 %v538, -0.16666654
        %v540 = vmul.f32 %v535, %v539
        %v541 = vadd.f32 %v540, 1.0
        %v542 = vmul.f32 %v541, %v526
        %vm543 = vweird.f32 %v233
        %v544 = vand.u32 %v527, 3
        %vm545 = vcmp.lt.s32.totalorder %v544, 2
        %vm546 = vcmp.eq.s32.totalorder %v544, 0
        %v547 = vxor.u32 %v542, 2147483648
        %v548 = vsel %vm546, %v534, %v547
        %vm549 = vcmp.eq.s32.totalorder %v544, 2
        %v550 = vxor.u32 %v534, 2147483648
        %v551 = vsel %vm549, %v550, %v542
        %v552 = vsel %vm545, %v548, %v551
        %v553 = vsel %vm543, nan, %v552
        %v554 = vand.u32 2147483647, %v234
        %vm555 = vcmp.le.f32.partialorder %v554, 0.7853982
        %vm556 = vcmp.lt.s32.totalorder %v234, 0
        %v557 = vand.u32 %v234, 2139095040
        %v558 = vshrl.u32 %v557, 23
        %v559 = vsub.s32 %v558, 127
        %v560 = vand.u32 2147483647, %v234
        %v561 = vand.u32 %v560, 8388607
        %v562 = vor.u32 %v561, 8388608
        %v563 = vsub.s32 0, %v562
        %v564 = vadd.s32 %v559, 1
        %vm565 = vcmp.gt.s32.totalorder %v564, 0
        %v566 = vsel %vm565, %v564, 0
        %v567 = vshrl.u32 %v566, 5
        %v568 = vand.u32 %v566, 31
        %v569 = vsub.s32 32, %v568
        %v570 = vshrl.u32 683565275, %v569
        %v571 = vshll.u32 683565275, %v568
        %v572 = vshrl.u32 2475754826, %v569
        %v573 = vor.u32 %v571, %v572
        %v574 = vshll.u32 2475754826, %v568
        %v575 = vshrl.u32 2131351028, %v569
        %v576 = vor.u32 %v574, %v575
        %v577 = vshll.u32 2131351028, %v568
        %v578 = vshrl.u32 2102212464, %v569
        %v579 = vor.u32 %v577, %v578
        %v580 = vshll.u32 2102212464, %v568
        %v581 = vshrl.u32 920167782, %v569
        %v582 = vor.u32 %v580, %v581
        %v583 = vshll.u32 920167782, %v568
        %v584 = vshrl.u32 1326507024, %v569
        %v585 = vor.u32 %v583, %v584
        %vm586 = vcmp.lt.s32.totalorder %v567, 1
        %vm587 = vcmp.lt.s32.totalorder %v567, 2
        %vm588 = vcmp.lt.s32.totalorder %v567, 3
        %vm589 = vcmp.lt.s32.totalorder %v567, 4
        %v590 = vsel %vm586, %v570, %v573
        %v591 = vsel %vm589, %v579, 2102212464
        %v592 = vsel %vm588, %v576, %v591
        %v593 = vsel %vm587, %v590, %v592
        %v594 = vsel %vm586, %v573, %v576
        %v595 = vsel %vm589, %v582, 920167782
        %v596 = vsel %vm588, %v579, %v595
        %v597 = vsel %vm587, %v594, %v596
        %v598 = vsel %vm586, %v576, %v579
        %v599 = vsel %vm589, %v585, 1326507024
        %v600 = vsel %vm588, %v582, %v599
        %v601 = vsel %vm587, %v598, %v600
        %v602 = vshll.u32 %v562, 8
        %v603 = vand.u32 %v602, 65535
        %v604 = vshrl.u32 %v602, 16
        %v605 = vand.u32 %v601, 65535
        %v606 = vshrl.u32 %v601, 16
        %v607 = vmul.u32 %v603, %v605
        %v608 = vmul.u32 %v603, %v606
        %v609 = vmul.u32 %v604, %v605
        %v610 = vmul.u32 %v604, %v606
        %v611 = vshll.u32 %v608, 16
        %v612 = vshrl.u32 %v608, 16
        %v613 = vshll.u32 %v609, 16
        %v614 = vshrl.u32 %v609, 16
        %vm615 = vc.u32 %v607, %v611
        %v616 = vsel %vm615, 1, 0
        %v617 = vadd.s32 %v607, %v611
        %v618 = vadd.s32 %v610, %v616
        %vm619 = vc.u32 %v617, %v613
        %v620 = vsel %vm619, 1, 0
        %v621 = vadd.s32 %v617, %v613
        %v622 = vadd.s32 %v618, %v620
        %v623 = vadd.s32 %v622, %v612
        %v624 = vadd.s32 %v623, %v614
        %v625 = vand.u32 %v602, 65535
        %v626 = vshrl.u32 %v602, 16
        %v627 = vand.u32 %v597, 65535
        %v628 = vshrl.u32 %v597, 16
        %v629 = vmul.u32 %v625, %v627
        %v630 = vmul.u32 %v625, %v628
        %v631 = vmul.u32 %v626, %v627
        %v632 = vmul.u32 %v626, %v628
        %v633 = vshll.u32 %v630, 16
        %v634 = vshrl.u32 %v630, 16
        %v635 = vshll.u32 %v631, 16
        %v636 = vshrl.u32 %v631, 16
        %vm637 = vc.u32 %v629, %v633
        %v638 = vsel %vm637, 1, 0
        %v639 = vadd.s32 %v629, %v633
        %v640 = vadd.s32 %v632, %v638
        %vm641 = vc.u32 %v639, %v635
        %v642 = vsel %vm641, 1, 0
        %v643 = vadd.s32 %v639, %v635
        %v644 = vadd.s32 %v640, %v642
        %v645 = vadd.s32 %v644, %v634
        %v646 = vadd.s32 %v645, %v636
        %v647 = vmul.u32 %v602, %v593
        %v648 = vadd.s32 %v624, %v643
        %vm649 = vc.u32 %v624, %v643
        %v650 = vadd.s32 %v646, 1
        %v651 = vsel %vm649, %v650, %v646
        %v652 = vadd.s32 %v647, %v651
        %v653 = vadd.s32 %v652, 536870912
        %v654 = vshrl.u32 %v653, 30
        %v655 = vshll.u32 %v654, 30
        %v656 = vsub.s32 %v652, %v655
        %vm657 = vcmp.lt.s32.totalorder %v656, 0
        %v658 = vsub.s32 0, %v656
        %v659 = vsel %vm657, %v658, %v656
        %v660 = vclz %v659
        %v661 = vsub.s32 %v660, 2
        %vm662 = vcmp.gt.s32.totalorder 0, %v661
        %v663 = vsel %vm662, 0, %v661
        %v664 = vsub.s32 32, %v663
        %v665 = vshll.u32 %v656, %v663
        %v666 = vshrl.u32 %v648, %v664
        %v667 = vor.u32 %v665, %v666
        %v668 = vsub.s32 4294967266, %v663
        %v669 = vadd.s32 %v668, 127
        %v670 = vshll.u32 %v669, 23
        %v671 = vor.u32 4788187, %v670
        %v672 = vand.u32 2147483647, %v671
        %v674 = vcvt.s32.f32 %v667
        %v675 = vmul.f32 %v674, %v672
        %v676 = vxor.u32 %v675, 2147483648
        %v677 = vsel %vm556, %v676, %v675
        %v678 = vsub.s32 4, %v654
        %v679 = vsel %vm556, %v678, %v654
        %v680 = vsel %vm555, %v234, %v677
        %v681 = vsel %vm555, 0, %v679
        %v682 = vmul.f32 %v680, %v680
        %v683 = vmul.f32 %v682, -0.001358992
        %v684 = vadd.f32 %v683, 0.041655596
        %v685 = vmul.f32 %v682, %v684
        %v686 = vadd.f32 %v685, -0.4999988
        %v687 = vmul.f32 %v682, %v686
        %v688 = vadd.f32 1.0, %v687
        %v689 = vmul.f32 %v680, %v680
        %v690 = vmul.f32 %v689, -0.00019511016
        %v691 = vadd.f32 %v690, 0.008332121
        %v692 = vmul.f32 %v689, %v691
        %v693 = vadd.f32 %v692, -0.16666654
        %v694 = vmul.f32 %v689, %v693
        %v695 = vadd.f32 %v694, 1.0
        %v696 = vmul.f32 %v695, %v680
        %vm697 = vweird.f32 %v234
        %v698 = vand.u32 %v681, 3
        %vm699 = vcmp.lt.s32.totalorder %v698, 2
        %vm700 = vcmp.eq.s32.totalorder %v698, 0
        %v701 = vxor.u32 %v696, 2147483648
        %v702 = vsel %vm700, %v688, %v701
        %vm703 = vcmp.eq.s32.totalorder %v698, 2
        %v704 = vxor.u32 %v688, 2147483648
        %v705 = vsel %vm703, %v704, %v696
        %v706 = vsel %vm699, %v702, %v705
        %v707 = vsel %vm697, nan, %v706
        %v708 = vand.u32 2147483647, %v235
        %vm709 = vcmp.le.f32.partialorder %v708, 0.7853982
        %vm710 = vcmp.lt.s32.totalorder %v235, 0
        %v711 = vand.u32 %v235, 2139095040
        %v712 = vshrl.u32 %v711, 23
        %v713 = vsub.s32 %v712, 127
        %v714 = vand.u32 2147483647, %v235
        %v715 = vand.u32 %v714, 8388607
        %v716 = vor.u32 %v715, 8388608
        %v717 = vsub.s32 0, %v716
        %v718 = vadd.s32 %v713, 1
        %vm719 = vcmp.gt.s32.totalorder %v718, 0
        %v720 = vsel %vm719, %v718, 0
        %v721 = vshrl.u32 %v720, 5
        %v722 = vand.u32 %v720, 31
        %v723 = vsub.s32 32, %v722
        %v724 = vshrl.u32 683565275, %v723
        %v725 = vshll.u32 683565275, %v722
        %v726 = vshrl.u32 2475754826, %v723
        %v727 = vor.u32 %v725, %v726
        %v728 = vshll.u32 2475754826, %v722
        %v729 = vshrl.u32 2131351028, %v723
        %v730 = vor.u32 %v728, %v729
        %v731 = vshll.u32 2131351028, %v722
        %v732 = vshrl.u32 2102212464, %v723
        %v733 = vor.u32 %v731, %v732
        %v734 = vshll.u32 2102212464, %v722
        %v735 = vshrl.u32 920167782, %v723
        %v736 = vor.u32 %v734, %v735
        %v737 = vshll.u32 920167782, %v722
        %v738 = vshrl.u32 1326507024, %v723
        %v739 = vor.u32 %v737, %v738
        %vm740 = vcmp.lt.s32.totalorder %v721, 1
        %vm741 = vcmp.lt.s32.totalorder %v721, 2
        %vm742 = vcmp.lt.s32.totalorder %v721, 3
        %vm743 = vcmp.lt.s32.totalorder %v721, 4
        %v744 = vsel %vm740, %v724, %v727
        %v745 = vsel %vm743, %v733, 2102212464
        %v746 = vsel %vm742, %v730, %v745
        %v747 = vsel %vm741, %v744, %v746
        %v748 = vsel %vm740, %v727, %v730
        %v749 = vsel %vm743, %v736, 920167782
        %v750 = vsel %vm742, %v733, %v749
        %v751 = vsel %vm741, %v748, %v750
        %v752 = vsel %vm740, %v730, %v733
        %v753 = vsel %vm743, %v739, 1326507024
        %v754 = vsel %vm742, %v736, %v753
        %v755 = vsel %vm741, %v752, %v754
        %v756 = vshll.u32 %v716, 8
        %v757 = vand.u32 %v756, 65535
        %v758 = vshrl.u32 %v756, 16
        %v759 = vand.u32 %v755, 65535
        %v760 = vshrl.u32 %v755, 16
        %v761 = vmul.u32 %v757, %v759
        %v762 = vmul.u32 %v757, %v760
        %v763 = vmul.u32 %v758, %v759
        %v764 = vmul.u32 %v758, %v760
        %v765 = vshll.u32 %v762, 16
        %v766 = vshrl.u32 %v762, 16
        %v767 = vshll.u32 %v763, 16
        %v768 = vshrl.u32 %v763, 16
        %vm769 = vc.u32 %v761, %v765
        %v770 = vsel %vm769, 1, 0
        %v771 = vadd.s32 %v761, %v765
        %v772 = vadd.s32 %v764, %v770
        %vm773 = vc.u32 %v771, %v767
        %v774 = vsel %vm773, 1, 0
        %v775 = vadd.s32 %v771, %v767
        %v776 = vadd.s32 %v772, %v774
        %v777 = vadd.s32 %v776, %v766
        %v778 = vadd.s32 %v777, %v768
        %v779 = vand.u32 %v756, 65535
        %v780 = vshrl.u32 %v756, 16
        %v781 = vand.u32 %v751, 65535
        %v782 = vshrl.u32 %v751, 16
        %v783 = vmul.u32 %v779, %v781
        %v784 = vmul.u32 %v779, %v782
        %v785 = vmul.u32 %v780, %v781
        %v786 = vmul.u32 %v780, %v782
        %v787 = vshll.u32 %v784, 16
        %v788 = vshrl.u32 %v784, 16
        %v789 = vshll.u32 %v785, 16
        %v790 = vshrl.u32 %v785, 16
        %vm791 = vc.u32 %v783, %v787
        %v792 = vsel %vm791, 1, 0
        %v793 = vadd.s32 %v783, %v787
        %v794 = vadd.s32 %v786, %v792
        %vm795 = vc.u32 %v793, %v789
        %v796 = vsel %vm795, 1, 0
        %v797 = vadd.s32 %v793, %v789
        %v798 = vadd.s32 %v794, %v796
        %v799 = vadd.s32 %v798, %v788
        %v800 = vadd.s32 %v799, %v790
        %v801 = vmul.u32 %v756, %v747
        %v802 = vadd.s32 %v778, %v797
        %vm803 = vc.u32 %v778, %v797
        %v804 = vadd.s32 %v800, 1
        %v805 = vsel %vm803, %v804, %v800
        %v806 = vadd.s32 %v801, %v805
        %v807 = vadd.s32 %v806, 536870912
        %v808 = vshrl.u32 %v807, 30
        %v809 = vshll.u32 %v808, 30
        %v810 = vsub.s32 %v806, %v809
        %vm811 = vcmp.lt.s32.totalorder %v810, 0
        %v812 = vsub.s32 0, %v810
        %v813 = vsel %vm811, %v812, %v810
        %v814 = vclz %v813
        %v815 = vsub.s32 %v814, 2
        %vm816 = vcmp.gt.s32.totalorder 0, %v815
        %v817 = vsel %vm816, 0, %v815
        %v818 = vsub.s32 32, %v817
        %v819 = vshll.u32 %v810, %v817
        %v820 = vshrl.u32 %v802, %v818
        %v821 = vor.u32 %v819, %v820
        %v822 = vsub.s32 4294967266, %v817
        %v823 = vadd.s32 %v822, 127
        %v824 = vshll.u32 %v823, 23
        %v825 = vor.u32 4788187, %v824
        %v826 = vand.u32 2147483647, %v825
        %v828 = vcvt.s32.f32 %v821
        %v829 = vmul.f32 %v828, %v826
        %v830 = vxor.u32 %v829, 2147483648
        %v831 = vsel %vm710, %v830, %v829
        %v832 = vsub.s32 4, %v808
        %v833 = vsel %vm710, %v832, %v808
        %v834 = vsel %vm709, %v235, %v831
        %v835 = vsel %vm709, 0, %v833
        %v836 = vmul.f32 %v834, %v834
        %v837 = vmul.f32 %v836, -0.001358992
        %v838 = vadd.f32 %v837, 0.041655596
        %v839 = vmul.f32 %v836, %v838
        %v840 = vadd.f32 %v839, -0.4999988
        %v841 = vmul.f32 %v836, %v840
        %v842 = vadd.f32 1.0, %v841
        %v843 = vmul.f32 %v834, %v834
        %v844 = vmul.f32 %v843, -0.00019511016
        %v845 = vadd.f32 %v844, 0.008332121
        %v846 = vmul.f32 %v843, %v845
        %v847 = vadd.f32 %v846, -0.16666654
        %v848 = vmul.f32 %v843, %v847
        %v849 = vadd.f32 %v848, 1.0
        %v850 = vmul.f32 %v849, %v834
        %vm851 = vweird.f32 %v235
        %v852 = vand.u32 %v835, 3
        %vm853 = vcmp.lt.s32.totalorder %v852, 2
        %vm854 = vcmp.eq.s32.totalorder %v852, 0
        %v855 = vxor.u32 %v850, 2147483648
        %v856 = vsel %vm854, %v842, %v855
        %vm857 = vcmp.eq.s32.totalorder %v852, 2
        %v858 = vxor.u32 %v842, 2147483648
        %v859 = vsel %vm857, %v858, %v850
        %v860 = vsel %vm853, %v856, %v859
        %v861 = vsel %vm851, nan, %v860
        %v862 = vand.u32 2147483647, %v236
        %vm863 = vcmp.le.f32.partialorder %v862, 0.7853982
        %vm864 = vcmp.lt.s32.totalorder %v236, 0
        %v865 = vand.u32 %v236, 2139095040
        %v866 = vshrl.u32 %v865, 23
        %v867 = vsub.s32 %v866, 127
        %v868 = vand.u32 2147483647, %v236
        %v869 = vand.u32 %v868, 8388607
        %v870 = vor.u32 %v869, 8388608
        %v871 = vsub.s32 0, %v870
        %v872 = vadd.s32 %v867, 1
        %vm873 = vcmp.gt.s32.totalorder %v872, 0
        %v874 = vsel %vm873, %v872, 0
        %v875 = vshrl.u32 %v874, 5
        %v876 = vand.u32 %v874, 31
        %v877 = vsub.s32 32, %v876
        %v878 = vshrl.u32 683565275, %v877
        %v879 = vshll.u32 683565275, %v876
        %v880 = vshrl.u32 2475754826, %v877
        %v881 = vor.u32 %v879, %v880
        %v882 = vshll.u32 2475754826, %v876
        %v883 = vshrl.u32 2131351028, %v877
        %v884 = vor.u32 %v882, %v883
        %v885 = vshll.u32 2131351028, %v876
        %v886 = vshrl.u32 2102212464, %v877
        %v887 = vor.u32 %v885, %v886
        %v888 = vshll.u32 2102212464, %v876
        %v889 = vshrl.u32 920167782, %v877
        %v890 = vor.u32 %v888, %v889
        %v891 = vshll.u32 920167782, %v876
        %v892 = vshrl.u32 1326507024, %v877
        %v893 = vor.u32 %v891, %v892
        %vm894 = vcmp.lt.s32.totalorder %v875, 1
        %vm895 = vcmp.lt.s32.totalorder %v875, 2
        %vm896 = vcmp.lt.s32.totalorder %v875, 3
        %vm897 = vcmp.lt.s32.totalorder %v875, 4
        %v898 = vsel %vm894, %v878, %v881
        %v899 = vsel %vm897, %v887, 2102212464
        %v900 = vsel %vm896, %v884, %v899
        %v901 = vsel %vm895, %v898, %v900
        %v902 = vsel %vm894, %v881, %v884
        %v903 = vsel %vm897, %v890, 920167782
        %v904 = vsel %vm896, %v887, %v903
        %v905 = vsel %vm895, %v902, %v904
        %v906 = vsel %vm894, %v884, %v887
        %v907 = vsel %vm897, %v893, 1326507024
        %v908 = vsel %vm896, %v890, %v907
        %v909 = vsel %vm895, %v906, %v908
        %v910 = vshll.u32 %v870, 8
        %v911 = vand.u32 %v910, 65535
        %v912 = vshrl.u32 %v910, 16
        %v913 = vand.u32 %v909, 65535
        %v914 = vshrl.u32 %v909, 16
        %v915 = vmul.u32 %v911, %v913
        %v916 = vmul.u32 %v911, %v914
        %v917 = vmul.u32 %v912, %v913
        %v918 = vmul.u32 %v912, %v914
        %v919 = vshll.u32 %v916, 16
        %v920 = vshrl.u32 %v916, 16
        %v921 = vshll.u32 %v917, 16
        %v922 = vshrl.u32 %v917, 16
        %vm923 = vc.u32 %v915, %v919
        %v924 = vsel %vm923, 1, 0
        %v925 = vadd.s32 %v915, %v919
        %v926 = vadd.s32 %v918, %v924
        %vm927 = vc.u32 %v925, %v921
        %v928 = vsel %vm927, 1, 0
        %v929 = vadd.s32 %v925, %v921
        %v930 = vadd.s32 %v926, %v928
        %v931 = vadd.s32 %v930, %v920
        %v932 = vadd.s32 %v931, %v922
        %v933 = vand.u32 %v910, 65535
        %v934 = vshrl.u32 %v910, 16
        %v935 = vand.u32 %v905, 65535
        %v936 = vshrl.u32 %v905, 16
        %v937 = vmul.u32 %v933, %v935
        %v938 = vmul.u32 %v933, %v936
        %v939 = vmul.u32 %v934, %v935
        %v940 = vmul.u32 %v934, %v936
        %v941 = vshll.u32 %v938, 16
        %v942 = vshrl.u32 %v938, 16
        %v943 = vshll.u32 %v939, 16
        %v944 = vshrl.u32 %v939, 16
        %vm945 = vc.u32 %v937, %v941
        %v946 = vsel %vm945, 1, 0
        %v947 = vadd.s32 %v937, %v941
        %v948 = vadd.s32 %v940, %v946
        %vm949 = vc.u32 %v947, %v943
        %v950 = vsel %vm949, 1, 0
        %v951 = vadd.s32 %v947, %v943
        %v952 = vadd.s32 %v948, %v950
        %v953 = vadd.s32 %v952, %v942
        %v954 = vadd.s32 %v953, %v944
        %v955 = vmul.u32 %v910, %v901
        %v956 = vadd.s32 %v932, %v951
        %vm957 = vc.u32 %v932, %v951
        %v958 = vadd.s32 %v954, 1
        %v959 = vsel %vm957, %v958, %v954
        %v960 = vadd.s32 %v955, %v959
        %v961 = vadd.s32 %v960, 536870912
        %v962 = vshrl.u32 %v961, 30
        %v963 = vshll.u32 %v962, 30
        %v964 = vsub.s32 %v960, %v963
        %vm965 = vcmp.lt.s32.totalorder %v964, 0
        %v966 = vsub.s32 0, %v964
        %v967 = vsel %vm965, %v966, %v964
        %v968 = vclz %v967
        %v969 = vsub.s32 %v968, 2
        %vm970 = vcmp.gt.s32.totalorder 0, %v969
        %v971 = vsel %vm970, 0, %v969
        %v972 = vsub.s32 32, %v971
        %v973 = vshll.u32 %v964, %v971
        %v974 = vshrl.u32 %v956, %v972
        %v975 = vor.u32 %v973, %v974
        %v976 = vsub.s32 4294967266, %v971
        %v977 = vadd.s32 %v976, 127
        %v978 = vshll.u32 %v977, 23
        %v979 = vor.u32 4788187, %v978
        %v980 = vand.u32 2147483647, %v979
        %v982 = vcvt.s32.f32 %v975
        %v983 = vmul.f32 %v982, %v980
        %v984 = vxor.u32 %v983, 2147483648
        %v985 = vsel %vm864, %v984, %v983
        %v986 = vsub.s32 4, %v962
        %v987 = vsel %vm864, %v986, %v962
        %v988 = vsel %vm863, %v236, %v985
        %v989 = vsel %vm863, 0, %v987
        %v990 = vmul.f32 %v988, %v988
        %v991 = vmul.f32 %v990, -0.001358992
        %v992 = vadd.f32 %v991, 0.041655596
        %v993 = vmul.f32 %v990, %v992
        %v994 = vadd.f32 %v993, -0.4999988
        %v995 = vmul.f32 %v990, %v994
        %v996 = vadd.f32 1.0, %v995
        %v997 = vmul.f32 %v988, %v988
        %v998 = vmul.f32 %v997, -0.00019511016
        %v999 = vadd.f32 %v998, 0.008332121
        %v1000 = vmul.f32 %v997, %v999
        %v1001 = vadd.f32 %v1000, -0.16666654
        %v1002 = vmul.f32 %v997, %v1001
        %v1003 = vadd.f32 %v1002, 1.0
        %v1004 = vmul.f32 %v1003, %v988
        %vm1005 = vweird.f32 %v236
        %v1006 = vand.u32 %v989, 3
        %vm1007 = vcmp.lt.s32.totalorder %v1006, 2
        %vm1008 = vcmp.eq.s32.totalorder %v1006, 0
        %v1009 = vxor.u32 %v1004, 2147483648
        %v1010 = vsel %vm1008, %v996, %v1009
        %vm1011 = vcmp.eq.s32.totalorder %v1006, 2
        %v1012 = vxor.u32 %v996, 2147483648
        %v1013 = vsel %vm1011, %v1012, %v1004
        %v1014 = vsel %vm1007, %v1010, %v1013
        %v1015 = vsel %vm1005, nan, %v1014
        %v1016 = vand.u32 2147483647, %v237
        %vm1017 = vcmp.le.f32.partialorder %v1016, 0.7853982
        %vm1018 = vcmp.lt.s32.totalorder %v237, 0
        %v1019 = vand.u32 %v237, 2139095040
        %v1020 = vshrl.u32 %v1019, 23
        %v1021 = vsub.s32 %v1020, 127
        %v1022 = vand.u32 2147483647, %v237
        %v1023 = vand.u32 %v1022, 8388607
        %v1024 = vor.u32 %v1023, 8388608
        %v1025 = vsub.s32 0, %v1024
        %v1026 = vadd.s32 %v1021, 1
        %vm1027 = vcmp.gt.s32.totalorder %v1026, 0
        %v1028 = vsel %vm1027, %v1026, 0
        %v1029 = vshrl.u32 %v1028, 5
        %v1030 = vand.u32 %v1028, 31
        %v1031 = vsub.s32 32, %v1030
        %v1032 = vshrl.u32 683565275, %v1031
        %v1033 = vshll.u32 683565275, %v1030
        %v1034 = vshrl.u32 2475754826, %v1031
        %v1035 = vor.u32 %v1033, %v1034
        %v1036 = vshll.u32 2475754826, %v1030
        %v1037 = vshrl.u32 2131351028, %v1031
        %v1038 = vor.u32 %v1036, %v1037
        %v1039 = vshll.u32 2131351028, %v1030
        %v1040 = vshrl.u32 2102212464, %v1031
        %v1041 = vor.u32 %v1039, %v1040
        %v1042 = vshll.u32 2102212464, %v1030
        %v1043 = vshrl.u32 920167782, %v1031
        %v1044 = vor.u32 %v1042, %v1043
        %v1045 = vshll.u32 920167782, %v1030
        %v1046 = vshrl.u32 1326507024, %v1031
        %v1047 = vor.u32 %v1045, %v1046
        %vm1048 = vcmp.lt.s32.totalorder %v1029, 1
        %vm1049 = vcmp.lt.s32.totalorder %v1029, 2
        %vm1050 = vcmp.lt.s32.totalorder %v1029, 3
        %vm1051 = vcmp.lt.s32.totalorder %v1029, 4
        %v1052 = vsel %vm1048, %v1032, %v1035
        %v1053 = vsel %vm1051, %v1041, 2102212464
        %v1054 = vsel %vm1050, %v1038, %v1053
        %v1055 = vsel %vm1049, %v1052, %v1054
        %v1056 = vsel %vm1048, %v1035, %v1038
        %v1057 = vsel %vm1051, %v1044, 920167782
        %v1058 = vsel %vm1050, %v1041, %v1057
        %v1059 = vsel %vm1049, %v1056, %v1058
        %v1060 = vsel %vm1048, %v1038, %v1041
        %v1061 = vsel %vm1051, %v1047, 1326507024
        %v1062 = vsel %vm1050, %v1044, %v1061
        %v1063 = vsel %vm1049, %v1060, %v1062
        %v1064 = vshll.u32 %v1024, 8
        %v1065 = vand.u32 %v1064, 65535
        %v1066 = vshrl.u32 %v1064, 16
        %v1067 = vand.u32 %v1063, 65535
        %v1068 = vshrl.u32 %v1063, 16
        %v1069 = vmul.u32 %v1065, %v1067
        %v1070 = vmul.u32 %v1065, %v1068
        %v1071 = vmul.u32 %v1066, %v1067
        %v1072 = vmul.u32 %v1066, %v1068
        %v1073 = vshll.u32 %v1070, 16
        %v1074 = vshrl.u32 %v1070, 16
        %v1075 = vshll.u32 %v1071, 16
        %v1076 = vshrl.u32 %v1071, 16
        %vm1077 = vc.u32 %v1069, %v1073
        %v1078 = vsel %vm1077, 1, 0
        %v1079 = vadd.s32 %v1069, %v1073
        %v1080 = vadd.s32 %v1072, %v1078
        %vm1081 = vc.u32 %v1079, %v1075
        %v1082 = vsel %vm1081, 1, 0
        %v1083 = vadd.s32 %v1079, %v1075
        %v1084 = vadd.s32 %v1080, %v1082
        %v1085 = vadd.s32 %v1084, %v1074
        %v1086 = vadd.s32 %v1085, %v1076
        %v1087 = vand.u32 %v1064, 65535
        %v1088 = vshrl.u32 %v1064, 16
        %v1089 = vand.u32 %v1059, 65535
        %v1090 = vshrl.u32 %v1059, 16
        %v1091 = vmul.u32 %v1087, %v1089
        %v1092 = vmul.u32 %v1087, %v1090
        %v1093 = vmul.u32 %v1088, %v1089
        %v1094 = vmul.u32 %v1088, %v1090
        %v1095 = vshll.u32 %v1092, 16
        %v1096 = vshrl.u32 %v1092, 16
        %v1097 = vshll.u32 %v1093, 16
        %v1098 = vshrl.u32 %v1093, 16
        %vm1099 = vc.u32 %v1091, %v1095
        %v1100 = vsel %vm1099, 1, 0
        %v1101 = vadd.s32 %v1091, %v1095
        %v1102 = vadd.s32 %v1094, %v1100
        %vm1103 = vc.u32 %v1101, %v1097
        %v1104 = vsel %vm1103, 1, 0
        %v1105 = vadd.s32 %v1101, %v1097
        %v1106 = vadd.s32 %v1102, %v1104
        %v1107 = vadd.s32 %v1106, %v1096
        %v1108 = vadd.s32 %v1107, %v1098
        %v1109 = vmul.u32 %v1064, %v1055
        %v1110 = vadd.s32 %v1086, %v1105
        %vm1111 = vc.u32 %v1086, %v1105
        %v1112 = vadd.s32 %v1108, 1
        %v1113 = vsel %vm1111, %v1112, %v1108
        %v1114 = vadd.s32 %v1109, %v1113
        %v1115 = vadd.s32 %v1114, 536870912
        %v1116 = vshrl.u32 %v1115, 30
        %v1117 = vshll.u32 %v1116, 30
        %v1118 = vsub.s32 %v1114, %v1117
        %vm1119 = vcmp.lt.s32.totalorder %v1118, 0
        %v1120 = vsub.s32 0, %v1118
        %v1121 = vsel %vm1119, %v1120, %v1118
        %v1122 = vclz %v1121
        %v1123 = vsub.s32 %v1122, 2
        %vm1124 = vcmp.gt.s32.totalorder 0, %v1123
        %v1125 = vsel %vm1124, 0, %v1123
        %v1126 = vsub.s32 32, %v1125
        %v1127 = vshll.u32 %v1118, %v1125
        %v1128 = vshrl.u32 %v1110, %v1126
        %v1129 = vor.u32 %v1127, %v1128
        %v1130 = vsub.s32 4294967266, %v1125
        %v1131 = vadd.s32 %v1130, 127
        %v1132 = vshll.u32 %v1131, 23
        %v1133 = vor.u32 4788187, %v1132
        %v1134 = vand.u32 2147483647, %v1133
        %v1136 = vcvt.s32.f32 %v1129
        %v1137 = vmul.f32 %v1136, %v1134
        %v1138 = vxor.u32 %v1137, 2147483648
        %v1139 = vsel %vm1018, %v1138, %v1137
        %v1140 = vsub.s32 4, %v1116
        %v1141 = vsel %vm1018, %v1140, %v1116
        %v1142 = vsel %vm1017, %v237, %v1139
        %v1143 = vsel %vm1017, 0, %v1141
        %v1144 = vmul.f32 %v1142, %v1142
        %v1145 = vmul.f32 %v1144, -0.001358992
        %v1146 = vadd.f32 %v1145, 0.041655596
        %v1147 = vmul.f32 %v1144, %v1146
        %v1148 = vadd.f32 %v1147, -0.4999988
        %v1149 = vmul.f32 %v1144, %v1148
        %v1150 = vadd.f32 1.0, %v1149
        %v1151 = vmul.f32 %v1142, %v1142
        %v1152 = vmul.f32 %v1151, -0.00019511016
        %v1153 = vadd.f32 %v1152, 0.008332121
        %v1154 = vmul.f32 %v1151, %v1153
        %v1155 = vadd.f32 %v1154, -0.16666654
        %v1156 = vmul.f32 %v1151, %v1155
        %v1157 = vadd.f32 %v1156, 1.0
        %v1158 = vmul.f32 %v1157, %v1142
        %vm1159 = vweird.f32 %v237
        %v1160 = vand.u32 %v1143, 3
        %vm1161 = vcmp.lt.s32.totalorder %v1160, 2
        %vm1162 = vcmp.eq.s32.totalorder %v1160, 0
        %v1163 = vxor.u32 %v1158, 2147483648
        %v1164 = vsel %vm1162, %v1150, %v1163
        %vm1165 = vcmp.eq.s32.totalorder %v1160, 2
        %v1166 = vxor.u32 %v1150, 2147483648
        %v1167 = vsel %vm1165, %v1166, %v1158
        %v1168 = vsel %vm1161, %v1164, %v1167
        %v1169 = vsel %vm1159, nan, %v1168
        %v1170 = vand.u32 2147483647, %v238
        %vm1171 = vcmp.le.f32.partialorder %v1170, 0.7853982
        %vm1172 = vcmp.lt.s32.totalorder %v238, 0
        %v1173 = vand.u32 %v238, 2139095040
        %v1174 = vshrl.u32 %v1173, 23
        %v1175 = vsub.s32 %v1174, 127
        %v1176 = vand.u32 2147483647, %v238
        %v1177 = vand.u32 %v1176, 8388607
        %v1178 = vor.u32 %v1177, 8388608
        %v1179 = vsub.s32 0, %v1178
        %v1180 = vadd.s32 %v1175, 1
        %vm1181 = vcmp.gt.s32.totalorder %v1180, 0
        %v1182 = vsel %vm1181, %v1180, 0
        %v1183 = vshrl.u32 %v1182, 5
        %v1184 = vand.u32 %v1182, 31
        %v1185 = vsub.s32 32, %v1184
        %v1186 = vshrl.u32 683565275, %v1185
        %v1187 = vshll.u32 683565275, %v1184
        %v1188 = vshrl.u32 2475754826, %v1185
        %v1189 = vor.u32 %v1187, %v1188
        %v1190 = vshll.u32 2475754826, %v1184
        %v1191 = vshrl.u32 2131351028, %v1185
        %v1192 = vor.u32 %v1190, %v1191
        %v1193 = vshll.u32 2131351028, %v1184
        %v1194 = vshrl.u32 2102212464, %v1185
        %v1195 = vor.u32 %v1193, %v1194
        %v1196 = vshll.u32 2102212464, %v1184
        %v1197 = vshrl.u32 920167782, %v1185
        %v1198 = vor.u32 %v1196, %v1197
        %v1199 = vshll.u32 920167782, %v1184
        %v1200 = vshrl.u32 1326507024, %v1185
        %v1201 = vor.u32 %v1199, %v1200
        %vm1202 = vcmp.lt.s32.totalorder %v1183, 1
        %vm1203 = vcmp.lt.s32.totalorder %v1183, 2
        %vm1204 = vcmp.lt.s32.totalorder %v1183, 3
        %vm1205 = vcmp.lt.s32.totalorder %v1183, 4
        %v1206 = vsel %vm1202, %v1186, %v1189
        %v1207 = vsel %vm1205, %v1195, 2102212464
        %v1208 = vsel %vm1204, %v1192, %v1207
        %v1209 = vsel %vm1203, %v1206, %v1208
        %v1210 = vsel %vm1202, %v1189, %v1192
        %v1211 = vsel %vm1205, %v1198, 920167782
        %v1212 = vsel %vm1204, %v1195, %v1211
        %v1213 = vsel %vm1203, %v1210, %v1212
        %v1214 = vsel %vm1202, %v1192, %v1195
        %v1215 = vsel %vm1205, %v1201, 1326507024
        %v1216 = vsel %vm1204, %v1198, %v1215
        %v1217 = vsel %vm1203, %v1214, %v1216
        %v1218 = vshll.u32 %v1178, 8
        %v1219 = vand.u32 %v1218, 65535
        %v1220 = vshrl.u32 %v1218, 16
        %v1221 = vand.u32 %v1217, 65535
        %v1222 = vshrl.u32 %v1217, 16
        %v1223 = vmul.u32 %v1219, %v1221
        %v1224 = vmul.u32 %v1219, %v1222
        %v1225 = vmul.u32 %v1220, %v1221
        %v1226 = vmul.u32 %v1220, %v1222
        %v1227 = vshll.u32 %v1224, 16
        %v1228 = vshrl.u32 %v1224, 16
        %v1229 = vshll.u32 %v1225, 16
        %v1230 = vshrl.u32 %v1225, 16
        %vm1231 = vc.u32 %v1223, %v1227
        %v1232 = vsel %vm1231, 1, 0
        %v1233 = vadd.s32 %v1223, %v1227
        %v1234 = vadd.s32 %v1226, %v1232
        %vm1235 = vc.u32 %v1233, %v1229
        %v1236 = vsel %vm1235, 1, 0
        %v1237 = vadd.s32 %v1233, %v1229
        %v1238 = vadd.s32 %v1234, %v1236
        %v1239 = vadd.s32 %v1238, %v1228
        %v1240 = vadd.s32 %v1239, %v1230
        %v1241 = vand.u32 %v1218, 65535
        %v1242 = vshrl.u32 %v1218, 16
        %v1243 = vand.u32 %v1213, 65535
        %v1244 = vshrl.u32 %v1213, 16
        %v1245 = vmul.u32 %v1241, %v1243
        %v1246 = vmul.u32 %v1241, %v1244
        %v1247 = vmul.u32 %v1242, %v1243
        %v1248 = vmul.u32 %v1242, %v1244
        %v1249 = vshll.u32 %v1246, 16
        %v1250 = vshrl.u32 %v1246, 16
        %v1251 = vshll.u32 %v1247, 16
        %v1252 = vshrl.u32 %v1247, 16
        %vm1253 = vc.u32 %v1245, %v1249
        %v1254 = vsel %vm1253, 1, 0
        %v1255 = vadd.s32 %v1245, %v1249
        %v1256 = vadd.s32 %v1248, %v1254
        %vm1257 = vc.u32 %v1255, %v1251
        %v1258 = vsel %vm1257, 1, 0
        %v1259 = vadd.s32 %v1255, %v1251
        %v1260 = vadd.s32 %v1256, %v1258
        %v1261 = vadd.s32 %v1260, %v1250
        %v1262 = vadd.s32 %v1261, %v1252
        %v1263 = vmul.u32 %v1218, %v1209
        %v1264 = vadd.s32 %v1240, %v1259
        %vm1265 = vc.u32 %v1240, %v1259
        %v1266 = vadd.s32 %v1262, 1
        %v1267 = vsel %vm1265, %v1266, %v1262
        %v1268 = vadd.s32 %v1263, %v1267
        %v1269 = vadd.s32 %v1268, 536870912
        %v1270 = vshrl.u32 %v1269, 30
        %v1271 = vshll.u32 %v1270, 30
        %v1272 = vsub.s32 %v1268, %v1271
        %vm1273 = vcmp.lt.s32.totalorder %v1272, 0
        %v1274 = vsub.s32 0, %v1272
        %v1275 = vsel %vm1273, %v1274, %v1272
        %v1276 = vclz %v1275
        %v1277 = vsub.s32 %v1276, 2
        %vm1278 = vcmp.gt.s32.totalorder 0, %v1277
        %v1279 = vsel %vm1278, 0, %v1277
        %v1280 = vsub.s32 32, %v1279
        %v1281 = vshll.u32 %v1272, %v1279
        %v1282 = vshrl.u32 %v1264, %v1280
        %v1283 = vor.u32 %v1281, %v1282
        %v1284 = vsub.s32 4294967266, %v1279
        %v1285 = vadd.s32 %v1284, 127
        %v1286 = vshll.u32 %v1285, 23
        %v1287 = vor.u32 4788187, %v1286
        %v1288 = vand.u32 2147483647, %v1287
        %v1290 = vcvt.s32.f32 %v1283
        %v1291 = vmul.f32 %v1290, %v1288
        %v1292 = vxor.u32 %v1291, 2147483648
        %v1293 = vsel %vm1172, %v1292, %v1291
        %v1294 = vsub.s32 4, %v1270
        %v1295 = vsel %vm1172, %v1294, %v1270
        %v1296 = vsel %vm1171, %v238, %v1293
        %v1297 = vsel %vm1171, 0, %v1295
        %v1298 = vmul.f32 %v1296, %v1296
        %v1299 = vmul.f32 %v1298, -0.001358992
        %v1300 = vadd.f32 %v1299, 0.041655596
        %v1301 = vmul.f32 %v1298, %v1300
        %v1302 = vadd.f32 %v1301, -0.4999988
        %v1303 = vmul.f32 %v1298, %v1302
        %v1304 = vadd.f32 1.0, %v1303
        %v1305 = vmul.f32 %v1296, %v1296
        %v1306 = vmul.f32 %v1305, -0.00019511016
        %v1307 = vadd.f32 %v1306, 0.008332121
        %v1308 = vmul.f32 %v1305, %v1307
        %v1309 = vadd.f32 %v1308, -0.16666654
        %v1310 = vmul.f32 %v1305, %v1309
        %v1311 = vadd.f32 %v1310, 1.0
        %v1312 = vmul.f32 %v1311, %v1296
        %vm1313 = vweird.f32 %v238
        %v1314 = vand.u32 %v1297, 3
        %vm1315 = vcmp.lt.s32.totalorder %v1314, 2
        %vm1316 = vcmp.eq.s32.totalorder %v1314, 0
        %v1317 = vxor.u32 %v1312, 2147483648
        %v1318 = vsel %vm1316, %v1304, %v1317
        %vm1319 = vcmp.eq.s32.totalorder %v1314, 2
        %v1320 = vxor.u32 %v1304, 2147483648
        %v1321 = vsel %vm1319, %v1320, %v1312
        %v1322 = vsel %vm1315, %v1318, %v1321
        %v1323 = vsel %vm1313, nan, %v1322
        %v1324 = vand.u32 2147483647, %v239
        %vm1325 = vcmp.le.f32.partialorder %v1324, 0.7853982
        %vm1326 = vcmp.lt.s32.totalorder %v239, 0
        %v1327 = vand.u32 %v239, 2139095040
        %v1328 = vshrl.u32 %v1327, 23
        %v1329 = vsub.s32 %v1328, 127
        %v1330 = vand.u32 2147483647, %v239
        %v1331 = vand.u32 %v1330, 8388607
        %v1332 = vor.u32 %v1331, 8388608
        %v1333 = vsub.s32 0, %v1332
        %v1334 = vadd.s32 %v1329, 1
        %vm1335 = vcmp.gt.s32.totalorder %v1334, 0
        %v1336 = vsel %vm1335, %v1334, 0
        %v1337 = vshrl.u32 %v1336, 5
        %v1338 = vand.u32 %v1336, 31
        %v1339 = vsub.s32 32, %v1338
        %v1340 = vshrl.u32 683565275, %v1339
        %v1341 = vshll.u32 683565275, %v1338
        %v1342 = vshrl.u32 2475754826, %v1339
        %v1343 = vor.u32 %v1341, %v1342
        %v1344 = vshll.u32 2475754826, %v1338
        %v1345 = vshrl.u32 2131351028, %v1339
        %v1346 = vor.u32 %v1344, %v1345
        %v1347 = vshll.u32 2131351028, %v1338
        %v1348 = vshrl.u32 2102212464, %v1339
        %v1349 = vor.u32 %v1347, %v1348
        %v1350 = vshll.u32 2102212464, %v1338
        %v1351 = vshrl.u32 920167782, %v1339
        %v1352 = vor.u32 %v1350, %v1351
        %v1353 = vshll.u32 920167782, %v1338
        %v1354 = vshrl.u32 1326507024, %v1339
        %v1355 = vor.u32 %v1353, %v1354
        %vm1356 = vcmp.lt.s32.totalorder %v1337, 1
        %vm1357 = vcmp.lt.s32.totalorder %v1337, 2
        %vm1358 = vcmp.lt.s32.totalorder %v1337, 3
        %vm1359 = vcmp.lt.s32.totalorder %v1337, 4
        %v1360 = vsel %vm1356, %v1340, %v1343
        %v1361 = vsel %vm1359, %v1349, 2102212464
        %v1362 = vsel %vm1358, %v1346, %v1361
        %v1363 = vsel %vm1357, %v1360, %v1362
        %v1364 = vsel %vm1356, %v1343, %v1346
        %v1365 = vsel %vm1359, %v1352, 920167782
        %v1366 = vsel %vm1358, %v1349, %v1365
        %v1367 = vsel %vm1357, %v1364, %v1366
        %v1368 = vsel %vm1356, %v1346, %v1349
        %v1369 = vsel %vm1359, %v1355, 1326507024
        %v1370 = vsel %vm1358, %v1352, %v1369
        %v1371 = vsel %vm1357, %v1368, %v1370
        %v1372 = vshll.u32 %v1332, 8
        %v1373 = vand.u32 %v1372, 65535
        %v1374 = vshrl.u32 %v1372, 16
        %v1375 = vand.u32 %v1371, 65535
        %v1376 = vshrl.u32 %v1371, 16
        %v1377 = vmul.u32 %v1373, %v1375
        %v1378 = vmul.u32 %v1373, %v1376
        %v1379 = vmul.u32 %v1374, %v1375
        %v1380 = vmul.u32 %v1374, %v1376
        %v1381 = vshll.u32 %v1378, 16
        %v1382 = vshrl.u32 %v1378, 16
        %v1383 = vshll.u32 %v1379, 16
        %v1384 = vshrl.u32 %v1379, 16
        %vm1385 = vc.u32 %v1377, %v1381
        %v1386 = vsel %vm1385, 1, 0
        %v1387 = vadd.s32 %v1377, %v1381
        %v1388 = vadd.s32 %v1380, %v1386
        %vm1389 = vc.u32 %v1387, %v1383
        %v1390 = vsel %vm1389, 1, 0
        %v1391 = vadd.s32 %v1387, %v1383
        %v1392 = vadd.s32 %v1388, %v1390
        %v1393 = vadd.s32 %v1392, %v1382
        %v1394 = vadd.s32 %v1393, %v1384
        %v1395 = vand.u32 %v1372, 65535
        %v1396 = vshrl.u32 %v1372, 16
        %v1397 = vand.u32 %v1367, 65535
        %v1398 = vshrl.u32 %v1367, 16
        %v1399 = vmul.u32 %v1395, %v1397
        %v1400 = vmul.u32 %v1395, %v1398
        %v1401 = vmul.u32 %v1396, %v1397
        %v1402 = vmul.u32 %v1396, %v1398
        %v1403 = vshll.u32 %v1400, 16
        %v1404 = vshrl.u32 %v1400, 16
        %v1405 = vshll.u32 %v1401, 16
        %v1406 = vshrl.u32 %v1401, 16
        %vm1407 = vc.u32 %v1399, %v1403
        %v1408 = vsel %vm1407, 1, 0
        %v1409 = vadd.s32 %v1399, %v1403
        %v1410 = vadd.s32 %v1402, %v1408
        %vm1411 = vc.u32 %v1409, %v1405
        %v1412 = vsel %vm1411, 1, 0
        %v1413 = vadd.s32 %v1409, %v1405
        %v1414 = vadd.s32 %v1410, %v1412
        %v1415 = vadd.s32 %v1414, %v1404
        %v1416 = vadd.s32 %v1415, %v1406
        %v1417 = vmul.u32 %v1372, %v1363
        %v1418 = vadd.s32 %v1394, %v1413
        %vm1419 = vc.u32 %v1394, %v1413
        %v1420 = vadd.s32 %v1416, 1
        %v1421 = vsel %vm1419, %v1420, %v1416
        %v1422 = vadd.s32 %v1417, %v1421
        %v1423 = vadd.s32 %v1422, 536870912
        %v1424 = vshrl.u32 %v1423, 30
        %v1425 = vshll.u32 %v1424, 30
        %v1426 = vsub.s32 %v1422, %v1425
        %vm1427 = vcmp.lt.s32.totalorder %v1426, 0
        %v1428 = vsub.s32 0, %v1426
        %v1429 = vsel %vm1427, %v1428, %v1426
        %v1430 = vclz %v1429
        %v1431 = vsub.s32 %v1430, 2
        %vm1432 = vcmp.gt.s32.totalorder 0, %v1431
        %v1433 = vsel %vm1432, 0, %v1431
        %v1434 = vsub.s32 32, %v1433
        %v1435 = vshll.u32 %v1426, %v1433
        %v1436 = vshrl.u32 %v1418, %v1434
        %v1437 = vor.u32 %v1435, %v1436
        %v1438 = vsub.s32 4294967266, %v1433
        %v1439 = vadd.s32 %v1438, 127
        %v1440 = vshll.u32 %v1439, 23
        %v1441 = vor.u32 4788187, %v1440
        %v1442 = vand.u32 2147483647, %v1441
        %v1444 = vcvt.s32.f32 %v1437
        %v1445 = vmul.f32 %v1444, %v1442
        %v1446 = vxor.u32 %v1445, 2147483648
        %v1447 = vsel %vm1326, %v1446, %v1445
        %v1448 = vsub.s32 4, %v1424
        %v1449 = vsel %vm1326, %v1448, %v1424
        %v1450 = vsel %vm1325, %v239, %v1447
        %v1451 = vsel %vm1325, 0, %v1449
        %v1452 = vmul.f32 %v1450, %v1450
        %v1453 = vmul.f32 %v1452, -0.001358992
        %v1454 = vadd.f32 %v1453, 0.041655596
        %v1455 = vmul.f32 %v1452, %v1454
        %v1456 = vadd.f32 %v1455, -0.4999988
        %v1457 = vmul.f32 %v1452, %v1456
        %v1458 = vadd.f32 1.0, %v1457
        %v1459 = vmul.f32 %v1450, %v1450
        %v1460 = vmul.f32 %v1459, -0.00019511016
        %v1461 = vadd.f32 %v1460, 0.008332121
        %v1462 = vmul.f32 %v1459, %v1461
        %v1463 = vadd.f32 %v1462, -0.16666654
        %v1464 = vmul.f32 %v1459, %v1463
        %v1465 = vadd.f32 %v1464, 1.0
        %v1466 = vmul.f32 %v1465, %v1450
        %vm1467 = vweird.f32 %v239
        %v1468 = vand.u32 %v1451, 3
        %vm1469 = vcmp.lt.s32.totalorder %v1468, 2
        %vm1470 = vcmp.eq.s32.totalorder %v1468, 0
        %v1471 = vxor.u32 %v1466, 2147483648
        %v1472 = vsel %vm1470, %v1458, %v1471
        %vm1473 = vcmp.eq.s32.totalorder %v1468, 2
        %v1474 = vxor.u32 %v1458, 2147483648
        %v1475 = vsel %vm1473, %v1474, %v1466
        %v1476 = vsel %vm1469, %v1472, %v1475
        %v1477 = vsel %vm1467, nan, %v1476
        %v1478 = vand.u32 2147483647, %v240
        %vm1479 = vcmp.le.f32.partialorder %v1478, 0.7853982
        %vm1480 = vcmp.lt.s32.totalorder %v240, 0
        %v1481 = vand.u32 %v240, 2139095040
        %v1482 = vshrl.u32 %v1481, 23
        %v1483 = vsub.s32 %v1482, 127
        %v1484 = vand.u32 2147483647, %v240
        %v1485 = vand.u32 %v1484, 8388607
        %v1486 = vor.u32 %v1485, 8388608
        %v1487 = vsub.s32 0, %v1486
        %v1488 = vadd.s32 %v1483, 1
        %vm1489 = vcmp.gt.s32.totalorder %v1488, 0
        %v1490 = vsel %vm1489, %v1488, 0
        %v1491 = vshrl.u32 %v1490, 5
        %v1492 = vand.u32 %v1490, 31
        %v1493 = vsub.s32 32, %v1492
        %v1494 = vshrl.u32 683565275, %v1493
        %v1495 = vshll.u32 683565275, %v1492
        %v1496 = vshrl.u32 2475754826, %v1493
        %v1497 = vor.u32 %v1495, %v1496
        %v1498 = vshll.u32 2475754826, %v1492
        %v1499 = vshrl.u32 2131351028, %v1493
        %v1500 = vor.u32 %v1498, %v1499
        %v1501 = vshll.u32 2131351028, %v1492
        %v1502 = vshrl.u32 2102212464, %v1493
        %v1503 = vor.u32 %v1501, %v1502
        %v1504 = vshll.u32 2102212464, %v1492
        %v1505 = vshrl.u32 920167782, %v1493
        %v1506 = vor.u32 %v1504, %v1505
        %v1507 = vshll.u32 920167782, %v1492
        %v1508 = vshrl.u32 1326507024, %v1493
        %v1509 = vor.u32 %v1507, %v1508
        %vm1510 = vcmp.lt.s32.totalorder %v1491, 1
        %vm1511 = vcmp.lt.s32.totalorder %v1491, 2
        %vm1512 = vcmp.lt.s32.totalorder %v1491, 3
        %vm1513 = vcmp.lt.s32.totalorder %v1491, 4
        %v1514 = vsel %vm1510, %v1494, %v1497
        %v1515 = vsel %vm1513, %v1503, 2102212464
        %v1516 = vsel %vm1512, %v1500, %v1515
        %v1517 = vsel %vm1511, %v1514, %v1516
        %v1518 = vsel %vm1510, %v1497, %v1500
        %v1519 = vsel %vm1513, %v1506, 920167782
        %v1520 = vsel %vm1512, %v1503, %v1519
        %v1521 = vsel %vm1511, %v1518, %v1520
        %v1522 = vsel %vm1510, %v1500, %v1503
        %v1523 = vsel %vm1513, %v1509, 1326507024
        %v1524 = vsel %vm1512, %v1506, %v1523
        %v1525 = vsel %vm1511, %v1522, %v1524
        %v1526 = vshll.u32 %v1486, 8
        %v1527 = vand.u32 %v1526, 65535
        %v1528 = vshrl.u32 %v1526, 16
        %v1529 = vand.u32 %v1525, 65535
        %v1530 = vshrl.u32 %v1525, 16
        %v1531 = vmul.u32 %v1527, %v1529
        %v1532 = vmul.u32 %v1527, %v1530
        %v1533 = vmul.u32 %v1528, %v1529
        %v1534 = vmul.u32 %v1528, %v1530
        %v1535 = vshll.u32 %v1532, 16
        %v1536 = vshrl.u32 %v1532, 16
        %v1537 = vshll.u32 %v1533, 16
        %v1538 = vshrl.u32 %v1533, 16
        %vm1539 = vc.u32 %v1531, %v1535
        %v1540 = vsel %vm1539, 1, 0
        %v1541 = vadd.s32 %v1531, %v1535
        %v1542 = vadd.s32 %v1534, %v1540
        %vm1543 = vc.u32 %v1541, %v1537
        %v1544 = vsel %vm1543, 1, 0
        %v1545 = vadd.s32 %v1541, %v1537
        %v1546 = vadd.s32 %v1542, %v1544
        %v1547 = vadd.s32 %v1546, %v1536
        %v1548 = vadd.s32 %v1547, %v1538
        %v1549 = vand.u32 %v1526, 65535
        %v1550 = vshrl.u32 %v1526, 16
        %v1551 = vand.u32 %v1521, 65535
        %v1552 = vshrl.u32 %v1521, 16
        %v1553 = vmul.u32 %v1549, %v1551
        %v1554 = vmul.u32 %v1549, %v1552
        %v1555 = vmul.u32 %v1550, %v1551
        %v1556 = vmul.u32 %v1550, %v1552
        %v1557 = vshll.u32 %v1554, 16
        %v1558 = vshrl.u32 %v1554, 16
        %v1559 = vshll.u32 %v1555, 16
        %v1560 = vshrl.u32 %v1555, 16
        %vm1561 = vc.u32 %v1553, %v1557
        %v1562 = vsel %vm1561, 1, 0
        %v1563 = vadd.s32 %v1553, %v1557
        %v1564 = vadd.s32 %v1556, %v1562
        %vm1565 = vc.u32 %v1563, %v1559
        %v1566 = vsel %vm1565, 1, 0
        %v1567 = vadd.s32 %v1563, %v1559
        %v1568 = vadd.s32 %v1564, %v1566
        %v1569 = vadd.s32 %v1568, %v1558
        %v1570 = vadd.s32 %v1569, %v1560
        %v1571 = vmul.u32 %v1526, %v1517
        %v1572 = vadd.s32 %v1548, %v1567
        %vm1573 = vc.u32 %v1548, %v1567
        %v1574 = vadd.s32 %v1570, 1
        %v1575 = vsel %vm1573, %v1574, %v1570
        %v1576 = vadd.s32 %v1571, %v1575
        %v1577 = vadd.s32 %v1576, 536870912
        %v1578 = vshrl.u32 %v1577, 30
        %v1579 = vshll.u32 %v1578, 30
        %v1580 = vsub.s32 %v1576, %v1579
        %vm1581 = vcmp.lt.s32.totalorder %v1580, 0
        %v1582 = vsub.s32 0, %v1580
        %v1583 = vsel %vm1581, %v1582, %v1580
        %v1584 = vclz %v1583
        %v1585 = vsub.s32 %v1584, 2
        %vm1586 = vcmp.gt.s32.totalorder 0, %v1585
        %v1587 = vsel %vm1586, 0, %v1585
        %v1588 = vsub.s32 32, %v1587
        %v1589 = vshll.u32 %v1580, %v1587
        %v1590 = vshrl.u32 %v1572, %v1588
        %v1591 = vor.u32 %v1589, %v1590
        %v1592 = vsub.s32 4294967266, %v1587
        %v1593 = vadd.s32 %v1592, 127
        %v1594 = vshll.u32 %v1593, 23
        %v1595 = vor.u32 4788187, %v1594
        %v1596 = vand.u32 2147483647, %v1595
        %v1598 = vcvt.s32.f32 %v1591
        %v1599 = vmul.f32 %v1598, %v1596
        %v1600 = vxor.u32 %v1599, 2147483648
        %v1601 = vsel %vm1480, %v1600, %v1599
        %v1602 = vsub.s32 4, %v1578
        %v1603 = vsel %vm1480, %v1602, %v1578
        %v1604 = vsel %vm1479, %v240, %v1601
        %v1605 = vsel %vm1479, 0, %v1603
        %v1606 = vmul.f32 %v1604, %v1604
        %v1607 = vmul.f32 %v1606, -0.001358992
        %v1608 = vadd.f32 %v1607, 0.041655596
        %v1609 = vmul.f32 %v1606, %v1608
        %v1610 = vadd.f32 %v1609, -0.4999988
        %v1611 = vmul.f32 %v1606, %v1610
        %v1612 = vadd.f32 1.0, %v1611
        %v1613 = vmul.f32 %v1604, %v1604
        %v1614 = vmul.f32 %v1613, -0.00019511016
        %v1615 = vadd.f32 %v1614, 0.008332121
        %v1616 = vmul.f32 %v1613, %v1615
        %v1617 = vadd.f32 %v1616, -0.16666654
        %v1618 = vmul.f32 %v1613, %v1617
        %v1619 = vadd.f32 %v1618, 1.0
        %v1620 = vmul.f32 %v1619, %v1604
        %vm1621 = vweird.f32 %v240
        %v1622 = vand.u32 %v1605, 3
        %vm1623 = vcmp.lt.s32.totalorder %v1622, 2
        %vm1624 = vcmp.eq.s32.totalorder %v1622, 0
        %v1625 = vxor.u32 %v1620, 2147483648
        %v1626 = vsel %vm1624, %v1612, %v1625
        %vm1627 = vcmp.eq.s32.totalorder %v1622, 2
        %v1628 = vxor.u32 %v1612, 2147483648
        %v1629 = vsel %vm1627, %v1628, %v1620
        %v1630 = vsel %vm1623, %v1626, %v1629
        %v1631 = vsel %vm1621, nan, %v1630
        %v1632 = vand.u32 2147483647, %v241
        %vm1633 = vcmp.le.f32.partialorder %v1632, 0.7853982
        %vm1634 = vcmp.lt.s32.totalorder %v241, 0
        %v1635 = vand.u32 %v241, 2139095040
        %v1636 = vshrl.u32 %v1635, 23
        %v1637 = vsub.s32 %v1636, 127
        %v1638 = vand.u32 2147483647, %v241
        %v1639 = vand.u32 %v1638, 8388607
        %v1640 = vor.u32 %v1639, 8388608
        %v1641 = vsub.s32 0, %v1640
        %v1642 = vadd.s32 %v1637, 1
        %vm1643 = vcmp.gt.s32.totalorder %v1642, 0
        %v1644 = vsel %vm1643, %v1642, 0
        %v1645 = vshrl.u32 %v1644, 5
        %v1646 = vand.u32 %v1644, 31
        %v1647 = vsub.s32 32, %v1646
        %v1648 = vshrl.u32 683565275, %v1647
        %v1649 = vshll.u32 683565275, %v1646
        %v1650 = vshrl.u32 2475754826, %v1647
        %v1651 = vor.u32 %v1649, %v1650
        %v1652 = vshll.u32 2475754826, %v1646
        %v1653 = vshrl.u32 2131351028, %v1647
        %v1654 = vor.u32 %v1652, %v1653
        %v1655 = vshll.u32 2131351028, %v1646
        %v1656 = vshrl.u32 2102212464, %v1647
        %v1657 = vor.u32 %v1655, %v1656
        %v1658 = vshll.u32 2102212464, %v1646
        %v1659 = vshrl.u32 920167782, %v1647
        %v1660 = vor.u32 %v1658, %v1659
        %v1661 = vshll.u32 920167782, %v1646
        %v1662 = vshrl.u32 1326507024, %v1647
        %v1663 = vor.u32 %v1661, %v1662
        %vm1664 = vcmp.lt.s32.totalorder %v1645, 1
        %vm1665 = vcmp.lt.s32.totalorder %v1645, 2
        %vm1666 = vcmp.lt.s32.totalorder %v1645, 3
        %vm1667 = vcmp.lt.s32.totalorder %v1645, 4
        %v1668 = vsel %vm1664, %v1648, %v1651
        %v1669 = vsel %vm1667, %v1657, 2102212464
        %v1670 = vsel %vm1666, %v1654, %v1669
        %v1671 = vsel %vm1665, %v1668, %v1670
        %v1672 = vsel %vm1664, %v1651, %v1654
        %v1673 = vsel %vm1667, %v1660, 920167782
        %v1674 = vsel %vm1666, %v1657, %v1673
        %v1675 = vsel %vm1665, %v1672, %v1674
        %v1676 = vsel %vm1664, %v1654, %v1657
        %v1677 = vsel %vm1667, %v1663, 1326507024
        %v1678 = vsel %vm1666, %v1660, %v1677
        %v1679 = vsel %vm1665, %v1676, %v1678
        %v1680 = vshll.u32 %v1640, 8
        %v1681 = vand.u32 %v1680, 65535
        %v1682 = vshrl.u32 %v1680, 16
        %v1683 = vand.u32 %v1679, 65535
        %v1684 = vshrl.u32 %v1679, 16
        %v1685 = vmul.u32 %v1681, %v1683
        %v1686 = vmul.u32 %v1681, %v1684
        %v1687 = vmul.u32 %v1682, %v1683
        %v1688 = vmul.u32 %v1682, %v1684
        %v1689 = vshll.u32 %v1686, 16
        %v1690 = vshrl.u32 %v1686, 16
        %v1691 = vshll.u32 %v1687, 16
        %v1692 = vshrl.u32 %v1687, 16
        %vm1693 = vc.u32 %v1685, %v1689
        %v1694 = vsel %vm1693, 1, 0
        %v1695 = vadd.s32 %v1685, %v1689
        %v1696 = vadd.s32 %v1688, %v1694
        %vm1697 = vc.u32 %v1695, %v1691
        %v1698 = vsel %vm1697, 1, 0
        %v1699 = vadd.s32 %v1695, %v1691
        %v1700 = vadd.s32 %v1696, %v1698
        %v1701 = vadd.s32 %v1700, %v1690
        %v1702 = vadd.s32 %v1701, %v1692
        %v1703 = vand.u32 %v1680, 65535
        %v1704 = vshrl.u32 %v1680, 16
        %v1705 = vand.u32 %v1675, 65535
        %v1706 = vshrl.u32 %v1675, 16
        %v1707 = vmul.u32 %v1703, %v1705
        %v1708 = vmul.u32 %v1703, %v1706
        %v1709 = vmul.u32 %v1704, %v1705
        %v1710 = vmul.u32 %v1704, %v1706
        %v1711 = vshll.u32 %v1708, 16
        %v1712 = vshrl.u32 %v1708, 16
        %v1713 = vshll.u32 %v1709, 16
        %v1714 = vshrl.u32 %v1709, 16
        %vm1715 = vc.u32 %v1707, %v1711
        %v1716 = vsel %vm1715, 1, 0
        %v1717 = vadd.s32 %v1707, %v1711
        %v1718 = vadd.s32 %v1710, %v1716
        %vm1719 = vc.u32 %v1717, %v1713
        %v1720 = vsel %vm1719, 1, 0
        %v1721 = vadd.s32 %v1717, %v1713
        %v1722 = vadd.s32 %v1718, %v1720
        %v1723 = vadd.s32 %v1722, %v1712
        %v1724 = vadd.s32 %v1723, %v1714
        %v1725 = vmul.u32 %v1680, %v1671
        %v1726 = vadd.s32 %v1702, %v1721
        %vm1727 = vc.u32 %v1702, %v1721
        %v1728 = vadd.s32 %v1724, 1
        %v1729 = vsel %vm1727, %v1728, %v1724
        %v1730 = vadd.s32 %v1725, %v1729
        %v1731 = vadd.s32 %v1730, 536870912
        %v1732 = vshrl.u32 %v1731, 30
        %v1733 = vshll.u32 %v1732, 30
        %v1734 = vsub.s32 %v1730, %v1733
        %vm1735 = vcmp.lt.s32.totalorder %v1734, 0
        %v1736 = vsub.s32 0, %v1734
        %v1737 = vsel %vm1735, %v1736, %v1734
        %v1738 = vclz %v1737
        %v1739 = vsub.s32 %v1738, 2
        %vm1740 = vcmp.gt.s32.totalorder 0, %v1739
        %v1741 = vsel %vm1740, 0, %v1739
        %v1742 = vsub.s32 32, %v1741
        %v1743 = vshll.u32 %v1734, %v1741
        %v1744 = vshrl.u32 %v1726, %v1742
        %v1745 = vor.u32 %v1743, %v1744
        %v1746 = vsub.s32 4294967266, %v1741
        %v1747 = vadd.s32 %v1746, 127
        %v1748 = vshll.u32 %v1747, 23
        %v1749 = vor.u32 4788187, %v1748
        %v1750 = vand.u32 2147483647, %v1749
        %v1752 = vcvt.s32.f32 %v1745
        %v1753 = vmul.f32 %v1752, %v1750
        %v1754 = vxor.u32 %v1753, 2147483648
        %v1755 = vsel %vm1634, %v1754, %v1753
        %v1756 = vsub.s32 4, %v1732
        %v1757 = vsel %vm1634, %v1756, %v1732
        %v1758 = vsel %vm1633, %v241, %v1755
        %v1759 = vsel %vm1633, 0, %v1757
        %v1760 = vmul.f32 %v1758, %v1758
        %v1761 = vmul.f32 %v1760, -0.001358992
        %v1762 = vadd.f32 %v1761, 0.041655596
        %v1763 = vmul.f32 %v1760, %v1762
        %v1764 = vadd.f32 %v1763, -0.4999988
        %v1765 = vmul.f32 %v1760, %v1764
        %v1766 = vadd.f32 1.0, %v1765
        %v1767 = vmul.f32 %v1758, %v1758
        %v1768 = vmul.f32 %v1767, -0.00019511016
        %v1769 = vadd.f32 %v1768, 0.008332121
        %v1770 = vmul.f32 %v1767, %v1769
        %v1771 = vadd.f32 %v1770, -0.16666654
        %v1772 = vmul.f32 %v1767, %v1771
        %v1773 = vadd.f32 %v1772, 1.0
        %v1774 = vmul.f32 %v1773, %v1758
        %vm1775 = vweird.f32 %v241
        %v1776 = vand.u32 %v1759, 3
        %vm1777 = vcmp.lt.s32.totalorder %v1776, 2
        %vm1778 = vcmp.eq.s32.totalorder %v1776, 0
        %v1779 = vxor.u32 %v1774, 2147483648
        %v1780 = vsel %vm1778, %v1766, %v1779
        %vm1781 = vcmp.eq.s32.totalorder %v1776, 2
        %v1782 = vxor.u32 %v1766, 2147483648
        %v1783 = vsel %vm1781, %v1782, %v1774
        %v1784 = vsel %vm1777, %v1780, %v1783
        %v1785 = vsel %vm1775, nan, %v1784
        %v1786 = vand.u32 2147483647, %v242
        %vm1787 = vcmp.le.f32.partialorder %v1786, 0.7853982
        %vm1788 = vcmp.lt.s32.totalorder %v242, 0
        %v1789 = vand.u32 %v242, 2139095040
        %v1790 = vshrl.u32 %v1789, 23
        %v1791 = vsub.s32 %v1790, 127
        %v1792 = vand.u32 2147483647, %v242
        %v1793 = vand.u32 %v1792, 8388607
        %v1794 = vor.u32 %v1793, 8388608
        %v1795 = vsub.s32 0, %v1794
        %v1796 = vadd.s32 %v1791, 1
        %vm1797 = vcmp.gt.s32.totalorder %v1796, 0
        %v1798 = vsel %vm1797, %v1796, 0
        %v1799 = vshrl.u32 %v1798, 5
        %v1800 = vand.u32 %v1798, 31
        %v1801 = vsub.s32 32, %v1800
        %v1802 = vshrl.u32 683565275, %v1801
        %v1803 = vshll.u32 683565275, %v1800
        %v1804 = vshrl.u32 2475754826, %v1801
        %v1805 = vor.u32 %v1803, %v1804
        %v1806 = vshll.u32 2475754826, %v1800
        %v1807 = vshrl.u32 2131351028, %v1801
        %v1808 = vor.u32 %v1806, %v1807
        %v1809 = vshll.u32 2131351028, %v1800
        %v1810 = vshrl.u32 2102212464, %v1801
        %v1811 = vor.u32 %v1809, %v1810
        %v1812 = vshll.u32 2102212464, %v1800
        %v1813 = vshrl.u32 920167782, %v1801
        %v1814 = vor.u32 %v1812, %v1813
        %v1815 = vshll.u32 920167782, %v1800
        %v1816 = vshrl.u32 1326507024, %v1801
        %v1817 = vor.u32 %v1815, %v1816
        %vm1818 = vcmp.lt.s32.totalorder %v1799, 1
        %vm1819 = vcmp.lt.s32.totalorder %v1799, 2
        %vm1820 = vcmp.lt.s32.totalorder %v1799, 3
        %vm1821 = vcmp.lt.s32.totalorder %v1799, 4
        %v1822 = vsel %vm1818, %v1802, %v1805
        %v1823 = vsel %vm1821, %v1811, 2102212464
        %v1824 = vsel %vm1820, %v1808, %v1823
        %v1825 = vsel %vm1819, %v1822, %v1824
        %v1826 = vsel %vm1818, %v1805, %v1808
        %v1827 = vsel %vm1821, %v1814, 920167782
        %v1828 = vsel %vm1820, %v1811, %v1827
        %v1829 = vsel %vm1819, %v1826, %v1828
        %v1830 = vsel %vm1818, %v1808, %v1811
        %v1831 = vsel %vm1821, %v1817, 1326507024
        %v1832 = vsel %vm1820, %v1814, %v1831
        %v1833 = vsel %vm1819, %v1830, %v1832
        %v1834 = vshll.u32 %v1794, 8
        %v1835 = vand.u32 %v1834, 65535
        %v1836 = vshrl.u32 %v1834, 16
        %v1837 = vand.u32 %v1833, 65535
        %v1838 = vshrl.u32 %v1833, 16
        %v1839 = vmul.u32 %v1835, %v1837
        %v1840 = vmul.u32 %v1835, %v1838
        %v1841 = vmul.u32 %v1836, %v1837
        %v1842 = vmul.u32 %v1836, %v1838
        %v1843 = vshll.u32 %v1840, 16
        %v1844 = vshrl.u32 %v1840, 16
        %v1845 = vshll.u32 %v1841, 16
        %v1846 = vshrl.u32 %v1841, 16
        %vm1847 = vc.u32 %v1839, %v1843
        %v1848 = vsel %vm1847, 1, 0
        %v1849 = vadd.s32 %v1839, %v1843
        %v1850 = vadd.s32 %v1842, %v1848
        %vm1851 = vc.u32 %v1849, %v1845
        %v1852 = vsel %vm1851, 1, 0
        %v1853 = vadd.s32 %v1849, %v1845
        %v1854 = vadd.s32 %v1850, %v1852
        %v1855 = vadd.s32 %v1854, %v1844
        %v1856 = vadd.s32 %v1855, %v1846
        %v1857 = vand.u32 %v1834, 65535
        %v1858 = vshrl.u32 %v1834, 16
        %v1859 = vand.u32 %v1829, 65535
        %v1860 = vshrl.u32 %v1829, 16
        %v1861 = vmul.u32 %v1857, %v1859
        %v1862 = vmul.u32 %v1857, %v1860
        %v1863 = vmul.u32 %v1858, %v1859
        %v1864 = vmul.u32 %v1858, %v1860
        %v1865 = vshll.u32 %v1862, 16
        %v1866 = vshrl.u32 %v1862, 16
        %v1867 = vshll.u32 %v1863, 16
        %v1868 = vshrl.u32 %v1863, 16
        %vm1869 = vc.u32 %v1861, %v1865
        %v1870 = vsel %vm1869, 1, 0
        %v1871 = vadd.s32 %v1861, %v1865
        %v1872 = vadd.s32 %v1864, %v1870
        %vm1873 = vc.u32 %v1871, %v1867
        %v1874 = vsel %vm1873, 1, 0
        %v1875 = vadd.s32 %v1871, %v1867
        %v1876 = vadd.s32 %v1872, %v1874
        %v1877 = vadd.s32 %v1876, %v1866
        %v1878 = vadd.s32 %v1877, %v1868
        %v1879 = vmul.u32 %v1834, %v1825
        %v1880 = vadd.s32 %v1856, %v1875
        %vm1881 = vc.u32 %v1856, %v1875
        %v1882 = vadd.s32 %v1878, 1
        %v1883 = vsel %vm1881, %v1882, %v1878
        %v1884 = vadd.s32 %v1879, %v1883
        %v1885 = vadd.s32 %v1884, 536870912
        %v1886 = vshrl.u32 %v1885, 30
        %v1887 = vshll.u32 %v1886, 30
        %v1888 = vsub.s32 %v1884, %v1887
        %vm1889 = vcmp.lt.s32.totalorder %v1888, 0
        %v1890 = vsub.s32 0, %v1888
        %v1891 = vsel %vm1889, %v1890, %v1888
        %v1892 = vclz %v1891
        %v1893 = vsub.s32 %v1892, 2
        %vm1894 = vcmp.gt.s32.totalorder 0, %v1893
        %v1895 = vsel %vm1894, 0, %v1893
        %v1896 = vsub.s32 32, %v1895
        %v1897 = vshll.u32 %v1888, %v1895
        %v1898 = vshrl.u32 %v1880, %v1896
        %v1899 = vor.u32 %v1897, %v1898
        %v1900 = vsub.s32 4294967266, %v1895
        %v1901 = vadd.s32 %v1900, 127
        %v1902 = vshll.u32 %v1901, 23
        %v1903 = vor.u32 4788187, %v1902
        %v1904 = vand.u32 2147483647, %v1903
        %v1906 = vcvt.s32.f32 %v1899
        %v1907 = vmul.f32 %v1906, %v1904
        %v1908 = vxor.u32 %v1907, 2147483648
        %v1909 = vsel %vm1788, %v1908, %v1907
        %v1910 = vsub.s32 4, %v1886
        %v1911 = vsel %vm1788, %v1910, %v1886
        %v1912 = vsel %vm1787, %v242, %v1909
        %v1913 = vsel %vm1787, 0, %v1911
        %v1914 = vmul.f32 %v1912, %v1912
        %v1915 = vmul.f32 %v1914, -0.001358992
        %v1916 = vadd.f32 %v1915, 0.041655596
        %v1917 = vmul.f32 %v1914, %v1916
        %v1918 = vadd.f32 %v1917, -0.4999988
        %v1919 = vmul.f32 %v1914, %v1918
        %v1920 = vadd.f32 1.0, %v1919
        %v1921 = vmul.f32 %v1912, %v1912
        %v1922 = vmul.f32 %v1921, -0.00019511016
        %v1923 = vadd.f32 %v1922, 0.008332121
        %v1924 = vmul.f32 %v1921, %v1923
        %v1925 = vadd.f32 %v1924, -0.16666654
        %v1926 = vmul.f32 %v1921, %v1925
        %v1927 = vadd.f32 %v1926, 1.0
        %v1928 = vmul.f32 %v1927, %v1912
        %vm1929 = vweird.f32 %v242
        %v1930 = vand.u32 %v1913, 3
        %vm1931 = vcmp.lt.s32.totalorder %v1930, 2
        %vm1932 = vcmp.eq.s32.totalorder %v1930, 0
        %v1933 = vxor.u32 %v1928, 2147483648
        %v1934 = vsel %vm1932, %v1920, %v1933
        %vm1935 = vcmp.eq.s32.totalorder %v1930, 2
        %v1936 = vxor.u32 %v1920, 2147483648
        %v1937 = vsel %vm1935, %v1936, %v1928
        %v1938 = vsel %vm1931, %v1934, %v1937
        %v1939 = vsel %vm1929, nan, %v1938
        %v1940 = vand.u32 2147483647, %v243
        %vm1941 = vcmp.le.f32.partialorder %v1940, 0.7853982
        %vm1942 = vcmp.lt.s32.totalorder %v243, 0
        %v1943 = vand.u32 %v243, 2139095040
        %v1944 = vshrl.u32 %v1943, 23
        %v1945 = vsub.s32 %v1944, 127
        %v1946 = vand.u32 2147483647, %v243
        %v1947 = vand.u32 %v1946, 8388607
        %v1948 = vor.u32 %v1947, 8388608
        %v1949 = vsub.s32 0, %v1948
        %v1950 = vadd.s32 %v1945, 1
        %vm1951 = vcmp.gt.s32.totalorder %v1950, 0
        %v1952 = vsel %vm1951, %v1950, 0
        %v1953 = vshrl.u32 %v1952, 5
        %v1954 = vand.u32 %v1952, 31
        %v1955 = vsub.s32 32, %v1954
        %v1956 = vshrl.u32 683565275, %v1955
        %v1957 = vshll.u32 683565275, %v1954
        %v1958 = vshrl.u32 2475754826, %v1955
        %v1959 = vor.u32 %v1957, %v1958
        %v1960 = vshll.u32 2475754826, %v1954
        %v1961 = vshrl.u32 2131351028, %v1955
        %v1962 = vor.u32 %v1960, %v1961
        %v1963 = vshll.u32 2131351028, %v1954
        %v1964 = vshrl.u32 2102212464, %v1955
        %v1965 = vor.u32 %v1963, %v1964
        %v1966 = vshll.u32 2102212464, %v1954
        %v1967 = vshrl.u32 920167782, %v1955
        %v1968 = vor.u32 %v1966, %v1967
        %v1969 = vshll.u32 920167782, %v1954
        %v1970 = vshrl.u32 1326507024, %v1955
        %v1971 = vor.u32 %v1969, %v1970
        %vm1972 = vcmp.lt.s32.totalorder %v1953, 1
        %vm1973 = vcmp.lt.s32.totalorder %v1953, 2
        %vm1974 = vcmp.lt.s32.totalorder %v1953, 3
        %vm1975 = vcmp.lt.s32.totalorder %v1953, 4
        %v1976 = vsel %vm1972, %v1956, %v1959
        %v1977 = vsel %vm1975, %v1965, 2102212464
        %v1978 = vsel %vm1974, %v1962, %v1977
        %v1979 = vsel %vm1973, %v1976, %v1978
        %v1980 = vsel %vm1972, %v1959, %v1962
        %v1981 = vsel %vm1975, %v1968, 920167782
        %v1982 = vsel %vm1974, %v1965, %v1981
        %v1983 = vsel %vm1973, %v1980, %v1982
        %v1984 = vsel %vm1972, %v1962, %v1965
        %v1985 = vsel %vm1975, %v1971, 1326507024
        %v1986 = vsel %vm1974, %v1968, %v1985
        %v1987 = vsel %vm1973, %v1984, %v1986
        %v1988 = vshll.u32 %v1948, 8
        %v1989 = vand.u32 %v1988, 65535
        %v1990 = vshrl.u32 %v1988, 16
        %v1991 = vand.u32 %v1987, 65535
        %v1992 = vshrl.u32 %v1987, 16
        %v1993 = vmul.u32 %v1989, %v1991
        %v1994 = vmul.u32 %v1989, %v1992
        %v1995 = vmul.u32 %v1990, %v1991
        %v1996 = vmul.u32 %v1990, %v1992
        %v1997 = vshll.u32 %v1994, 16
        %v1998 = vshrl.u32 %v1994, 16
        %v1999 = vshll.u32 %v1995, 16
        %v2000 = vshrl.u32 %v1995, 16
        %vm2001 = vc.u32 %v1993, %v1997
        %v2002 = vsel %vm2001, 1, 0
        %v2003 = vadd.s32 %v1993, %v1997
        %v2004 = vadd.s32 %v1996, %v2002
        %vm2005 = vc.u32 %v2003, %v1999
        %v2006 = vsel %vm2005, 1, 0
        %v2007 = vadd.s32 %v2003, %v1999
        %v2008 = vadd.s32 %v2004, %v2006
        %v2009 = vadd.s32 %v2008, %v1998
        %v2010 = vadd.s32 %v2009, %v2000
        %v2011 = vand.u32 %v1988, 65535
        %v2012 = vshrl.u32 %v1988, 16
        %v2013 = vand.u32 %v1983, 65535
        %v2014 = vshrl.u32 %v1983, 16
        %v2015 = vmul.u32 %v2011, %v2013
        %v2016 = vmul.u32 %v2011, %v2014
        %v2017 = vmul.u32 %v2012, %v2013
        %v2018 = vmul.u32 %v2012, %v2014
        %v2019 = vshll.u32 %v2016, 16
        %v2020 = vshrl.u32 %v2016, 16
        %v2021 = vshll.u32 %v2017, 16
        %v2022 = vshrl.u32 %v2017, 16
        %vm2023 = vc.u32 %v2015, %v2019
        %v2024 = vsel %vm2023, 1, 0
        %v2025 = vadd.s32 %v2015, %v2019
        %v2026 = vadd.s32 %v2018, %v2024
        %vm2027 = vc.u32 %v2025, %v2021
        %v2028 = vsel %vm2027, 1, 0
        %v2029 = vadd.s32 %v2025, %v2021
        %v2030 = vadd.s32 %v2026, %v2028
        %v2031 = vadd.s32 %v2030, %v2020
        %v2032 = vadd.s32 %v2031, %v2022
        %v2033 = vmul.u32 %v1988, %v1979
        %v2034 = vadd.s32 %v2010, %v2029
        %vm2035 = vc.u32 %v2010, %v2029
        %v2036 = vadd.s32 %v2032, 1
        %v2037 = vsel %vm2035, %v2036, %v2032
        %v2038 = vadd.s32 %v2033, %v2037
        %v2039 = vadd.s32 %v2038, 536870912
        %v2040 = vshrl.u32 %v2039, 30
        %v2041 = vshll.u32 %v2040, 30
        %v2042 = vsub.s32 %v2038, %v2041
        %vm2043 = vcmp.lt.s32.totalorder %v2042, 0
        %v2044 = vsub.s32 0, %v2042
        %v2045 = vsel %vm2043, %v2044, %v2042
        %v2046 = vclz %v2045
        %v2047 = vsub.s32 %v2046, 2
        %vm2048 = vcmp.gt.s32.totalorder 0, %v2047
        %v2049 = vsel %vm2048, 0, %v2047
        %v2050 = vsub.s32 32, %v2049
        %v2051 = vshll.u32 %v2042, %v2049
        %v2052 = vshrl.u32 %v2034, %v2050
        %v2053 = vor.u32 %v2051, %v2052
        %v2054 = vsub.s32 4294967266, %v2049
        %v2055 = vadd.s32 %v2054, 127
        %v2056 = vshll.u32 %v2055, 23
        %v2057 = vor.u32 4788187, %v2056
        %v2058 = vand.u32 2147483647, %v2057
        %v2060 = vcvt.s32.f32 %v2053
        %v2061 = vmul.f32 %v2060, %v2058
        %v2062 = vxor.u32 %v2061, 2147483648
        %v2063 = vsel %vm1942, %v2062, %v2061
        %v2064 = vsub.s32 4, %v2040
        %v2065 = vsel %vm1942, %v2064, %v2040
        %v2066 = vsel %vm1941, %v243, %v2063
        %v2067 = vsel %vm1941, 0, %v2065
        %v2068 = vmul.f32 %v2066, %v2066
        %v2069 = vmul.f32 %v2068, -0.001358992
        %v2070 = vadd.f32 %v2069, 0.041655596
        %v2071 = vmul.f32 %v2068, %v2070
        %v2072 = vadd.f32 %v2071, -0.4999988
        %v2073 = vmul.f32 %v2068, %v2072
        %v2074 = vadd.f32 1.0, %v2073
        %v2075 = vmul.f32 %v2066, %v2066
        %v2076 = vmul.f32 %v2075, -0.00019511016
        %v2077 = vadd.f32 %v2076, 0.008332121
        %v2078 = vmul.f32 %v2075, %v2077
        %v2079 = vadd.f32 %v2078, -0.16666654
        %v2080 = vmul.f32 %v2075, %v2079
        %v2081 = vadd.f32 %v2080, 1.0
        %v2082 = vmul.f32 %v2081, %v2066
        %vm2083 = vweird.f32 %v243
        %v2084 = vand.u32 %v2067, 3
        %vm2085 = vcmp.lt.s32.totalorder %v2084, 2
        %vm2086 = vcmp.eq.s32.totalorder %v2084, 0
        %v2087 = vxor.u32 %v2082, 2147483648
        %v2088 = vsel %vm2086, %v2074, %v2087
        %vm2089 = vcmp.eq.s32.totalorder %v2084, 2
        %v2090 = vxor.u32 %v2074, 2147483648
        %v2091 = vsel %vm2089, %v2090, %v2082
        %v2092 = vsel %vm2085, %v2088, %v2091
        %v2093 = vsel %vm2083, nan, %v2092
        %v2094 = vand.u32 2147483647, %v244
        %vm2095 = vcmp.le.f32.partialorder %v2094, 0.7853982
        %vm2096 = vcmp.lt.s32.totalorder %v244, 0
        %v2097 = vand.u32 %v244, 2139095040
        %v2098 = vshrl.u32 %v2097, 23
        %v2099 = vsub.s32 %v2098, 127
        %v2100 = vand.u32 2147483647, %v244
        %v2101 = vand.u32 %v2100, 8388607
        %v2102 = vor.u32 %v2101, 8388608
        %v2103 = vsub.s32 0, %v2102
        %v2104 = vadd.s32 %v2099, 1
        %vm2105 = vcmp.gt.s32.totalorder %v2104, 0
        %v2106 = vsel %vm2105, %v2104, 0
        %v2107 = vshrl.u32 %v2106, 5
        %v2108 = vand.u32 %v2106, 31
        %v2109 = vsub.s32 32, %v2108
        %v2110 = vshrl.u32 683565275, %v2109
        %v2111 = vshll.u32 683565275, %v2108
        %v2112 = vshrl.u32 2475754826, %v2109
        %v2113 = vor.u32 %v2111, %v2112
        %v2114 = vshll.u32 2475754826, %v2108
        %v2115 = vshrl.u32 2131351028, %v2109
        %v2116 = vor.u32 %v2114, %v2115
        %v2117 = vshll.u32 2131351028, %v2108
        %v2118 = vshrl.u32 2102212464, %v2109
        %v2119 = vor.u32 %v2117, %v2118
        %v2120 = vshll.u32 2102212464, %v2108
        %v2121 = vshrl.u32 920167782, %v2109
        %v2122 = vor.u32 %v2120, %v2121
        %v2123 = vshll.u32 920167782, %v2108
        %v2124 = vshrl.u32 1326507024, %v2109
        %v2125 = vor.u32 %v2123, %v2124
        %vm2126 = vcmp.lt.s32.totalorder %v2107, 1
        %vm2127 = vcmp.lt.s32.totalorder %v2107, 2
        %vm2128 = vcmp.lt.s32.totalorder %v2107, 3
        %vm2129 = vcmp.lt.s32.totalorder %v2107, 4
        %v2130 = vsel %vm2126, %v2110, %v2113
        %v2131 = vsel %vm2129, %v2119, 2102212464
        %v2132 = vsel %vm2128, %v2116, %v2131
        %v2133 = vsel %vm2127, %v2130, %v2132
        %v2134 = vsel %vm2126, %v2113, %v2116
        %v2135 = vsel %vm2129, %v2122, 920167782
        %v2136 = vsel %vm2128, %v2119, %v2135
        %v2137 = vsel %vm2127, %v2134, %v2136
        %v2138 = vsel %vm2126, %v2116, %v2119
        %v2139 = vsel %vm2129, %v2125, 1326507024
        %v2140 = vsel %vm2128, %v2122, %v2139
        %v2141 = vsel %vm2127, %v2138, %v2140
        %v2142 = vshll.u32 %v2102, 8
        %v2143 = vand.u32 %v2142, 65535
        %v2144 = vshrl.u32 %v2142, 16
        %v2145 = vand.u32 %v2141, 65535
        %v2146 = vshrl.u32 %v2141, 16
        %v2147 = vmul.u32 %v2143, %v2145
        %v2148 = vmul.u32 %v2143, %v2146
        %v2149 = vmul.u32 %v2144, %v2145
        %v2150 = vmul.u32 %v2144, %v2146
        %v2151 = vshll.u32 %v2148, 16
        %v2152 = vshrl.u32 %v2148, 16
        %v2153 = vshll.u32 %v2149, 16
        %v2154 = vshrl.u32 %v2149, 16
        %vm2155 = vc.u32 %v2147, %v2151
        %v2156 = vsel %vm2155, 1, 0
        %v2157 = vadd.s32 %v2147, %v2151
        %v2158 = vadd.s32 %v2150, %v2156
        %vm2159 = vc.u32 %v2157, %v2153
        %v2160 = vsel %vm2159, 1, 0
        %v2161 = vadd.s32 %v2157, %v2153
        %v2162 = vadd.s32 %v2158, %v2160
        %v2163 = vadd.s32 %v2162, %v2152
        %v2164 = vadd.s32 %v2163, %v2154
        %v2165 = vand.u32 %v2142, 65535
        %v2166 = vshrl.u32 %v2142, 16
        %v2167 = vand.u32 %v2137, 65535
        %v2168 = vshrl.u32 %v2137, 16
        %v2169 = vmul.u32 %v2165, %v2167
        %v2170 = vmul.u32 %v2165, %v2168
        %v2171 = vmul.u32 %v2166, %v2167
        %v2172 = vmul.u32 %v2166, %v2168
        %v2173 = vshll.u32 %v2170, 16
        %v2174 = vshrl.u32 %v2170, 16
        %v2175 = vshll.u32 %v2171, 16
        %v2176 = vshrl.u32 %v2171, 16
        %vm2177 = vc.u32 %v2169, %v2173
        %v2178 = vsel %vm2177, 1, 0
        %v2179 = vadd.s32 %v2169, %v2173
        %v2180 = vadd.s32 %v2172, %v2178
        %vm2181 = vc.u32 %v2179, %v2175
        %v2182 = vsel %vm2181, 1, 0
        %v2183 = vadd.s32 %v2179, %v2175
        %v2184 = vadd.s32 %v2180, %v2182
        %v2185 = vadd.s32 %v2184, %v2174
        %v2186 = vadd.s32 %v2185, %v2176
        %v2187 = vmul.u32 %v2142, %v2133
        %v2188 = vadd.s32 %v2164, %v2183
        %vm2189 = vc.u32 %v2164, %v2183
        %v2190 = vadd.s32 %v2186, 1
        %v2191 = vsel %vm2189, %v2190, %v2186
        %v2192 = vadd.s32 %v2187, %v2191
        %v2193 = vadd.s32 %v2192, 536870912
        %v2194 = vshrl.u32 %v2193, 30
        %v2195 = vshll.u32 %v2194, 30
        %v2196 = vsub.s32 %v2192, %v2195
        %vm2197 = vcmp.lt.s32.totalorder %v2196, 0
        %v2198 = vsub.s32 0, %v2196
        %v2199 = vsel %vm2197, %v2198, %v2196
        %v2200 = vclz %v2199
        %v2201 = vsub.s32 %v2200, 2
        %vm2202 = vcmp.gt.s32.totalorder 0, %v2201
        %v2203 = vsel %vm2202, 0, %v2201
        %v2204 = vsub.s32 32, %v2203
        %v2205 = vshll.u32 %v2196, %v2203
        %v2206 = vshrl.u32 %v2188, %v2204
        %v2207 = vor.u32 %v2205, %v2206
        %v2208 = vsub.s32 4294967266, %v2203
        %v2209 = vadd.s32 %v2208, 127
        %v2210 = vshll.u32 %v2209, 23
        %v2211 = vor.u32 4788187, %v2210
        %v2212 = vand.u32 2147483647, %v2211
        %v2214 = vcvt.s32.f32 %v2207
        %v2215 = vmul.f32 %v2214, %v2212
        %v2216 = vxor.u32 %v2215, 2147483648
        %v2217 = vsel %vm2096, %v2216, %v2215
        %v2218 = vsub.s32 4, %v2194
        %v2219 = vsel %vm2096, %v2218, %v2194
        %v2220 = vsel %vm2095, %v244, %v2217
        %v2221 = vsel %vm2095, 0, %v2219
        %v2222 = vmul.f32 %v2220, %v2220
        %v2223 = vmul.f32 %v2222, -0.001358992
        %v2224 = vadd.f32 %v2223, 0.041655596
        %v2225 = vmul.f32 %v2222, %v2224
        %v2226 = vadd.f32 %v2225, -0.4999988
        %v2227 = vmul.f32 %v2222, %v2226
        %v2228 = vadd.f32 1.0, %v2227
        %v2229 = vmul.f32 %v2220, %v2220
        %v2230 = vmul.f32 %v2229, -0.00019511016
        %v2231 = vadd.f32 %v2230, 0.008332121
        %v2232 = vmul.f32 %v2229, %v2231
        %v2233 = vadd.f32 %v2232, -0.16666654
        %v2234 = vmul.f32 %v2229, %v2233
        %v2235 = vadd.f32 %v2234, 1.0
        %v2236 = vmul.f32 %v2235, %v2220
        %vm2237 = vweird.f32 %v244
        %v2238 = vand.u32 %v2221, 3
        %vm2239 = vcmp.lt.s32.totalorder %v2238, 2
        %vm2240 = vcmp.eq.s32.totalorder %v2238, 0
        %v2241 = vxor.u32 %v2236, 2147483648
        %v2242 = vsel %vm2240, %v2228, %v2241
        %vm2243 = vcmp.eq.s32.totalorder %v2238, 2
        %v2244 = vxor.u32 %v2228, 2147483648
        %v2245 = vsel %vm2243, %v2244, %v2236
        %v2246 = vsel %vm2239, %v2242, %v2245
        %v2247 = vsel %vm2237, nan, %v2246
        %v2248 = vand.u32 2147483647, %v245
        %vm2249 = vcmp.le.f32.partialorder %v2248, 0.7853982
        %vm2250 = vcmp.lt.s32.totalorder %v245, 0
        %v2251 = vand.u32 %v245, 2139095040
        %v2252 = vshrl.u32 %v2251, 23
        %v2253 = vsub.s32 %v2252, 127
        %v2254 = vand.u32 2147483647, %v245
        %v2255 = vand.u32 %v2254, 8388607
        %v2256 = vor.u32 %v2255, 8388608
        %v2257 = vsub.s32 0, %v2256
        %v2258 = vadd.s32 %v2253, 1
        %vm2259 = vcmp.gt.s32.totalorder %v2258, 0
        %v2260 = vsel %vm2259, %v2258, 0
        %v2261 = vshrl.u32 %v2260, 5
        %v2262 = vand.u32 %v2260, 31
        %v2263 = vsub.s32 32, %v2262
        %v2264 = vshrl.u32 683565275, %v2263
        %v2265 = vshll.u32 683565275, %v2262
        %v2266 = vshrl.u32 2475754826, %v2263
        %v2267 = vor.u32 %v2265, %v2266
        %v2268 = vshll.u32 2475754826, %v2262
        %v2269 = vshrl.u32 2131351028, %v2263
        %v2270 = vor.u32 %v2268, %v2269
        %v2271 = vshll.u32 2131351028, %v2262
        %v2272 = vshrl.u32 2102212464, %v2263
        %v2273 = vor.u32 %v2271, %v2272
        %v2274 = vshll.u32 2102212464, %v2262
        %v2275 = vshrl.u32 920167782, %v2263
        %v2276 = vor.u32 %v2274, %v2275
        %v2277 = vshll.u32 920167782, %v2262
        %v2278 = vshrl.u32 1326507024, %v2263
        %v2279 = vor.u32 %v2277, %v2278
        %vm2280 = vcmp.lt.s32.totalorder %v2261, 1
        %vm2281 = vcmp.lt.s32.totalorder %v2261, 2
        %vm2282 = vcmp.lt.s32.totalorder %v2261, 3
        %vm2283 = vcmp.lt.s32.totalorder %v2261, 4
        %v2284 = vsel %vm2280, %v2264, %v2267
        %v2285 = vsel %vm2283, %v2273, 2102212464
        %v2286 = vsel %vm2282, %v2270, %v2285
        %v2287 = vsel %vm2281, %v2284, %v2286
        %v2288 = vsel %vm2280, %v2267, %v2270
        %v2289 = vsel %vm2283, %v2276, 920167782
        %v2290 = vsel %vm2282, %v2273, %v2289
        %v2291 = vsel %vm2281, %v2288, %v2290
        %v2292 = vsel %vm2280, %v2270, %v2273
        %v2293 = vsel %vm2283, %v2279, 1326507024
        %v2294 = vsel %vm2282, %v2276, %v2293
        %v2295 = vsel %vm2281, %v2292, %v2294
        %v2296 = vshll.u32 %v2256, 8
        %v2297 = vand.u32 %v2296, 65535
        %v2298 = vshrl.u32 %v2296, 16
        %v2299 = vand.u32 %v2295, 65535
        %v2300 = vshrl.u32 %v2295, 16
        %v2301 = vmul.u32 %v2297, %v2299
        %v2302 = vmul.u32 %v2297, %v2300
        %v2303 = vmul.u32 %v2298, %v2299
        %v2304 = vmul.u32 %v2298, %v2300
        %v2305 = vshll.u32 %v2302, 16
        %v2306 = vshrl.u32 %v2302, 16
        %v2307 = vshll.u32 %v2303, 16
        %v2308 = vshrl.u32 %v2303, 16
        %vm2309 = vc.u32 %v2301, %v2305
        %v2310 = vsel %vm2309, 1, 0
        %v2311 = vadd.s32 %v2301, %v2305
        %v2312 = vadd.s32 %v2304, %v2310
        %vm2313 = vc.u32 %v2311, %v2307
        %v2314 = vsel %vm2313, 1, 0
        %v2315 = vadd.s32 %v2311, %v2307
        %v2316 = vadd.s32 %v2312, %v2314
        %v2317 = vadd.s32 %v2316, %v2306
        %v2318 = vadd.s32 %v2317, %v2308
        %v2319 = vand.u32 %v2296, 65535
        %v2320 = vshrl.u32 %v2296, 16
        %v2321 = vand.u32 %v2291, 65535
        %v2322 = vshrl.u32 %v2291, 16
        %v2323 = vmul.u32 %v2319, %v2321
        %v2324 = vmul.u32 %v2319, %v2322
        %v2325 = vmul.u32 %v2320, %v2321
        %v2326 = vmul.u32 %v2320, %v2322
        %v2327 = vshll.u32 %v2324, 16
        %v2328 = vshrl.u32 %v2324, 16
        %v2329 = vshll.u32 %v2325, 16
        %v2330 = vshrl.u32 %v2325, 16
        %vm2331 = vc.u32 %v2323, %v2327
        %v2332 = vsel %vm2331, 1, 0
        %v2333 = vadd.s32 %v2323, %v2327
        %v2334 = vadd.s32 %v2326, %v2332
        %vm2335 = vc.u32 %v2333, %v2329
        %v2336 = vsel %vm2335, 1, 0
        %v2337 = vadd.s32 %v2333, %v2329
        %v2338 = vadd.s32 %v2334, %v2336
        %v2339 = vadd.s32 %v2338, %v2328
        %v2340 = vadd.s32 %v2339, %v2330
        %v2341 = vmul.u32 %v2296, %v2287
        %v2342 = vadd.s32 %v2318, %v2337
        %vm2343 = vc.u32 %v2318, %v2337
        %v2344 = vadd.s32 %v2340, 1
        %v2345 = vsel %vm2343, %v2344, %v2340
        %v2346 = vadd.s32 %v2341, %v2345
        %v2347 = vadd.s32 %v2346, 536870912
        %v2348 = vshrl.u32 %v2347, 30
        %v2349 = vshll.u32 %v2348, 30
        %v2350 = vsub.s32 %v2346, %v2349
        %vm2351 = vcmp.lt.s32.totalorder %v2350, 0
        %v2352 = vsub.s32 0, %v2350
        %v2353 = vsel %vm2351, %v2352, %v2350
        %v2354 = vclz %v2353
        %v2355 = vsub.s32 %v2354, 2
        %vm2356 = vcmp.gt.s32.totalorder 0, %v2355
        %v2357 = vsel %vm2356, 0, %v2355
        %v2358 = vsub.s32 32, %v2357
        %v2359 = vshll.u32 %v2350, %v2357
        %v2360 = vshrl.u32 %v2342, %v2358
        %v2361 = vor.u32 %v2359, %v2360
        %v2362 = vsub.s32 4294967266, %v2357
        %v2363 = vadd.s32 %v2362, 127
        %v2364 = vshll.u32 %v2363, 23
        %v2365 = vor.u32 4788187, %v2364
        %v2366 = vand.u32 2147483647, %v2365
        %v2368 = vcvt.s32.f32 %v2361
        %v2369 = vmul.f32 %v2368, %v2366
        %v2370 = vxor.u32 %v2369, 2147483648
        %v2371 = vsel %vm2250, %v2370, %v2369
        %v2372 = vsub.s32 4, %v2348
        %v2373 = vsel %vm2250, %v2372, %v2348
        %v2374 = vsel %vm2249, %v245, %v2371
        %v2375 = vsel %vm2249, 0, %v2373
        %v2376 = vmul.f32 %v2374, %v2374
        %v2377 = vmul.f32 %v2376, -0.001358992
        %v2378 = vadd.f32 %v2377, 0.041655596
        %v2379 = vmul.f32 %v2376, %v2378
        %v2380 = vadd.f32 %v2379, -0.4999988
        %v2381 = vmul.f32 %v2376, %v2380
        %v2382 = vadd.f32 1.0, %v2381
        %v2383 = vmul.f32 %v2374, %v2374
        %v2384 = vmul.f32 %v2383, -0.00019511016
        %v2385 = vadd.f32 %v2384, 0.008332121
        %v2386 = vmul.f32 %v2383, %v2385
        %v2387 = vadd.f32 %v2386, -0.16666654
        %v2388 = vmul.f32 %v2383, %v2387
        %v2389 = vadd.f32 %v2388, 1.0
        %v2390 = vmul.f32 %v2389, %v2374
        %vm2391 = vweird.f32 %v245
        %v2392 = vand.u32 %v2375, 3
        %vm2393 = vcmp.lt.s32.totalorder %v2392, 2
        %vm2394 = vcmp.eq.s32.totalorder %v2392, 0
        %v2395 = vxor.u32 %v2390, 2147483648
        %v2396 = vsel %vm2394, %v2382, %v2395
        %vm2397 = vcmp.eq.s32.totalorder %v2392, 2
        %v2398 = vxor.u32 %v2382, 2147483648
        %v2399 = vsel %vm2397, %v2398, %v2390
        %v2400 = vsel %vm2393, %v2396, %v2399
        %v2401 = vsel %vm2391, nan, %v2400
        %2402 = vxpose.xlu0.b32.start [1/16] %v399, 128
        %2403 = vxpose.xlu0.b32.cont [2/16] %v707, 128
        %2404 = vxpose.xlu0.b32.cont [3/16] %v1015, 128
        %2405 = vxpose.xlu0.b32.cont [4/16] %v1323, 128
        %2406 = vxpose.xlu0.b32.cont [5/16] %v1631, 128
        %2407 = vxpose.xlu0.b32.cont [6/16] %v1939, 128
        %2408 = vxpose.xlu0.b32.cont [7/16] %v2247, 128
        %2409 = vxpose.xlu0.b32.cont [8/16] 0.0, 128
        %2410 = vxpose.xlu0.b32.cont [9/16] 0.0, 128
        %2411 = vxpose.xlu0.b32.cont [10/16] 0.0, 128
        %2412 = vxpose.xlu0.b32.cont [11/16] 0.0, 128
        %2413 = vxpose.xlu0.b32.cont [12/16] 0.0, 128
        %2414 = vxpose.xlu0.b32.cont [13/16] 0.0, 128
        %2415 = vxpose.xlu0.b32.cont [14/16] 0.0, 128
        %2416 = vxpose.xlu0.b32.cont [15/16] 0.0, 128
        %2417 = vxpose.xlu0.b32.end [16/16] 0.0, 128
        %v2418 = vpop.trf.xlu0
        %v2419 = vpop.trf.xlu0
        %v2420 = vpop.trf.xlu0
        %v2421 = vpop.trf.xlu0
        %v2422 = vpop.trf.xlu0
        %v2423 = vpop.trf.xlu0
        %v2424 = vpop.trf.xlu0
        %v2425 = vpop.trf.xlu0
        %v2426 = vpop.trf.xlu0
        %v2427 = vpop.trf.xlu0
        %v2428 = vpop.trf.xlu0
        %v2429 = vpop.trf.xlu0
        %v2430 = vpop.trf.xlu0
        %v2431 = vpop.trf.xlu0
        %v2432 = vpop.trf.xlu0
        %v2433 = vpop.trf.xlu0
        %2434 = vxpose.xlu0.b32.start [1/16] %v553, 128
        %2435 = vxpose.xlu0.b32.cont [2/16] %v861, 128
        %2436 = vxpose.xlu0.b32.cont [3/16] %v1169, 128
        %2437 = vxpose.xlu0.b32.cont [4/16] %v1477, 128
        %2438 = vxpose.xlu0.b32.cont [5/16] %v1785, 128
        %2439 = vxpose.xlu0.b32.cont [6/16] %v2093, 128
        %2440 = vxpose.xlu0.b32.cont [7/16] %v2401, 128
        %2441 = vxpose.xlu0.b32.cont [8/16] 0.0, 128
        %2442 = vxpose.xlu0.b32.cont [9/16] 0.0, 128
        %2443 = vxpose.xlu0.b32.cont [10/16] 0.0, 128
        %2444 = vxpose.xlu0.b32.cont [11/16] 0.0, 128
        %2445 = vxpose.xlu0.b32.cont [12/16] 0.0, 128
        %2446 = vxpose.xlu0.b32.cont [13/16] 0.0, 128
        %2447 = vxpose.xlu0.b32.cont [14/16] 0.0, 128
        %2448 = vxpose.xlu0.b32.cont [15/16] 0.0, 128
        %2449 = vxpose.xlu0.b32.end [16/16] 0.0, 128
        %v2450 = vpop.trf.xlu0
        %v2451 = vpop.trf.xlu0
        %v2452 = vpop.trf.xlu0
        %v2453 = vpop.trf.xlu0
        %v2454 = vpop.trf.xlu0
        %v2455 = vpop.trf.xlu0
        %v2456 = vpop.trf.xlu0
        %v2457 = vpop.trf.xlu0
        %v2458 = vpop.trf.xlu0
        %v2459 = vpop.trf.xlu0
        %v2460 = vpop.trf.xlu0
        %v2461 = vpop.trf.xlu0
        %v2462 = vpop.trf.xlu0
        %v2463 = vpop.trf.xlu0
        %v2464 = vpop.trf.xlu0
        %v2465 = vpop.trf.xlu0
        %vm2466 = vcmask 408576
        %2467 = vst.msk [vmem:[%s131] sm:$0xff] %vm2466, %v2418
        %2468 = vst.msk [vmem:[%s131 + $0x8] sm:$0xff] %vm2466, %v2419
        %2469 = vst.msk [vmem:[%s131 + $0x10] sm:$0xff] %vm2466, %v2420
        %2470 = vst.msk [vmem:[%s131 + $0x18] sm:$0xff] %vm2466, %v2421
        %2471 = vst.msk [vmem:[%s131 + $0x20] sm:$0xff] %vm2466, %v2422
        %2472 = vst.msk [vmem:[%s131 + $0x28] sm:$0xff] %vm2466, %v2423
        %2473 = vst.msk [vmem:[%s131 + $0x30] sm:$0xff] %vm2466, %v2424
        %2474 = vst.msk [vmem:[%s131 + $0x38] sm:$0xff] %vm2466, %v2425
        %2475 = vst.msk [vmem:[%s131 + $0x40] sm:$0xff] %vm2466, %v2426
        %2476 = vst.msk [vmem:[%s131 + $0x48] sm:$0xff] %vm2466, %v2427
        %2477 = vst.msk [vmem:[%s131 + $0x50] sm:$0xff] %vm2466, %v2428
        %2478 = vst.msk [vmem:[%s131 + $0x58] sm:$0xff] %vm2466, %v2429
        %2479 = vst.msk [vmem:[%s131 + $0x60] sm:$0xff] %vm2466, %v2430
        %2480 = vst.msk [vmem:[%s131 + $0x68] sm:$0xff] %vm2466, %v2431
        %2481 = vst.msk [vmem:[%s131 + $0x70] sm:$0xff] %vm2466, %v2432
        %2482 = vst.msk [vmem:[%s131 + $0x78] sm:$0xff] %vm2466, %v2433
        %2483 = vst.msk [vmem:[%s131 + $0x80] sm:$0xff] %vm2466, %v2450
        %2484 = vst.msk [vmem:[%s131 + $0x88] sm:$0xff] %vm2466, %v2451
        %2485 = vst.msk [vmem:[%s131 + $0x90] sm:$0xff] %vm2466, %v2452
        %2486 = vst.msk [vmem:[%s131 + $0x98] sm:$0xff] %vm2466, %v2453
        %2487 = vst.msk [vmem:[%s131 + $0xa0] sm:$0xff] %vm2466, %v2454
        %2488 = vst.msk [vmem:[%s131 + $0xa8] sm:$0xff] %vm2466, %v2455
        %2489 = vst.msk [vmem:[%s131 + $0xb0] sm:$0xff] %vm2466, %v2456
        %2490 = vst.msk [vmem:[%s131 + $0xb8] sm:$0xff] %vm2466, %v2457
        %2491 = vst.msk [vmem:[%s131 + $0xc0] sm:$0xff] %vm2466, %v2458
        %2492 = vst.msk [vmem:[%s131 + $0xc8] sm:$0xff] %vm2466, %v2459
        %2493 = vst.msk [vmem:[%s131 + $0xd0] sm:$0xff] %vm2466, %v2460
        %2494 = vst.msk [vmem:[%s131 + $0xd8] sm:$0xff] %vm2466, %v2461
        %2495 = vst.msk [vmem:[%s131 + $0xe0] sm:$0xff] %vm2466, %v2462
        %2496 = vst.msk [vmem:[%s131 + $0xe8] sm:$0xff] %vm2466, %v2463
        %2497 = vst.msk [vmem:[%s131 + $0xf0] sm:$0xff] %vm2466, %v2464
        %2498 = vst.msk [vmem:[%s131 + $0xf8] sm:$0xff] %vm2466, %v2465
        %s2499 = sand.u32 %s68, 1
        %s2500 = sand.u32 %s68, 1
        %s2501 = smul.addr %s2500, 256
        %s2502 = scalar_lea.vmem [#allocation2], %s2501
        // Predicated region
        $region29: #{tpu_custom_call.1} parent=27 // pred_check
          %p2503 = pneg %p78
        $region30: #{tpu_custom_call.1} parent=27 // pred_check_branch
          %2505 = sbr.rel (%p2503) target = $region32
        $region31: #{tpu_custom_call.1} parent=27 // pred_region
          %s2506 = smul.u32 32, %s13
          %s2507 = ssub.s32 125, %s2506
          %p2508 = scmp.lt.s32.totalorder %s2507, 32
          %s2509 = scalar_select %p2508, %s2507, 32
          %s2510 = smul.u32 8, %s2509
          %p2511 = scmp.ne.s32.totalorder 0, %s2510
          %s2512 = smul.addr %s2506, 8
          %s2513 = scalar_lea.vmem %s2, %s2512
          // Predicated region
          $region33: #{tpu_custom_call.1} parent=31 // pred_check
            %p2514 = pneg %p2511
          $region34: #{tpu_custom_call.1} parent=31 // pred_check_branch
            %2516 = sbr.rel (%p2514) target = $region36
          $region35: #{tpu_custom_call.1} parent=31 // pred_region
            // Predicated region
            $region37: #{tpu_custom_call.1} parent=35 // pred_check
              _
            $region38: #{tpu_custom_call.1} parent=35 // pred_check_branch
              %2518 = sbr.rel (0) target = $region40
            $region39: #{tpu_custom_call.1} parent=35 // pred_region
              // Predicated region
              $region59: #{tpu_custom_call.1} parent=39 // pred_check
                _
              $region60: #{tpu_custom_call.1} parent=39 // pred_check_branch
                %2630 = sbr.rel (0) target = $region62
              $region61: #{tpu_custom_call.1} parent=39 // pred_region
                %s2631 = sshrl.u32 %s2509, 5
                // While loop
                $region63: #{tpu_custom_call.1} parent=61 // loop_pre_header
                  _
                $region64: #{tpu_custom_call.1} parent=61 // loop_header
                  %s2633 = sphi 0, %s2635
                  %p2634 = scmp.ge.s32.totalorder %s2633, %s2631
                  %s2638 = sphi 0, %s2707
                  %s2639 = sphi %s2502, %s2710
                  %s2640 = sphi %s2513, %s2711
                $region65: #{tpu_custom_call.1} parent=61 // loop_header_branch
                  %2637 = sbr.rel (%p2634) target = $region69
                $region66: #{tpu_custom_call.1} parent=61 // loop_body
                  %v2641 = vld [vmem:[%s2639] sm:$0xff]
                  %2642 = vst [vmem:[%s2640] sm:$0xff] %v2641
                  %v2643 = vld [vmem:[%s2639 + $0x8] sm:$0xff]
                  %2644 = vst [vmem:[%s2640 + $0x8] sm:$0xff] %v2643
                  %v2645 = vld [vmem:[%s2639 + $0x10] sm:$0xff]
                  %2646 = vst [vmem:[%s2640 + $0x10] sm:$0xff] %v2645
                  %v2647 = vld [vmem:[%s2639 + $0x18] sm:$0xff]
                  %2648 = vst [vmem:[%s2640 + $0x18] sm:$0xff] %v2647
                  %v2649 = vld [vmem:[%s2639 + $0x20] sm:$0xff]
                  %2650 = vst [vmem:[%s2640 + $0x20] sm:$0xff] %v2649
                  %v2651 = vld [vmem:[%s2639 + $0x28] sm:$0xff]
                  %2652 = vst [vmem:[%s2640 + $0x28] sm:$0xff] %v2651
                  %v2653 = vld [vmem:[%s2639 + $0x30] sm:$0xff]
                  %2654 = vst [vmem:[%s2640 + $0x30] sm:$0xff] %v2653
                  %v2655 = vld [vmem:[%s2639 + $0x38] sm:$0xff]
                  %2656 = vst [vmem:[%s2640 + $0x38] sm:$0xff] %v2655
                  %v2657 = vld [vmem:[%s2639 + $0x40] sm:$0xff]
                  %2658 = vst [vmem:[%s2640 + $0x40] sm:$0xff] %v2657
                  %v2659 = vld [vmem:[%s2639 + $0x48] sm:$0xff]
                  %2660 = vst [vmem:[%s2640 + $0x48] sm:$0xff] %v2659
                  %v2661 = vld [vmem:[%s2639 + $0x50] sm:$0xff]
                  %2662 = vst [vmem:[%s2640 + $0x50] sm:$0xff] %v2661
                  %v2663 = vld [vmem:[%s2639 + $0x58] sm:$0xff]
                  %2664 = vst [vmem:[%s2640 + $0x58] sm:$0xff] %v2663
                  %v2665 = vld [vmem:[%s2639 + $0x60] sm:$0xff]
                  %2666 = vst [vmem:[%s2640 + $0x60] sm:$0xff] %v2665
                  %v2667 = vld [vmem:[%s2639 + $0x68] sm:$0xff]
                  %2668 = vst [vmem:[%s2640 + $0x68] sm:$0xff] %v2667
                  %v2669 = vld [vmem:[%s2639 + $0x70] sm:$0xff]
                  %2670 = vst [vmem:[%s2640 + $0x70] sm:$0xff] %v2669
                  %v2671 = vld [vmem:[%s2639 + $0x78] sm:$0xff]
                  %2672 = vst [vmem:[%s2640 + $0x78] sm:$0xff] %v2671
                  %v2673 = vld [vmem:[%s2639 + $0x80] sm:$0xff]
                  %2674 = vst [vmem:[%s2640 + $0x80] sm:$0xff] %v2673
                  %v2675 = vld [vmem:[%s2639 + $0x88] sm:$0xff]
                  %2676 = vst [vmem:[%s2640 + $0x88] sm:$0xff] %v2675
                  %v2677 = vld [vmem:[%s2639 + $0x90] sm:$0xff]
                  %2678 = vst [vmem:[%s2640 + $0x90] sm:$0xff] %v2677
                  %v2679 = vld [vmem:[%s2639 + $0x98] sm:$0xff]
                  %2680 = vst [vmem:[%s2640 + $0x98] sm:$0xff] %v2679
                  %v2681 = vld [vmem:[%s2639 + $0xa0] sm:$0xff]
                  %2682 = vst [vmem:[%s2640 + $0xa0] sm:$0xff] %v2681
                  %v2683 = vld [vmem:[%s2639 + $0xa8] sm:$0xff]
                  %2684 = vst [vmem:[%s2640 + $0xa8] sm:$0xff] %v2683
                  %v2685 = vld [vmem:[%s2639 + $0xb0] sm:$0xff]
                  %2686 = vst [vmem:[%s2640 + $0xb0] sm:$0xff] %v2685
                  %v2687 = vld [vmem:[%s2639 + $0xb8] sm:$0xff]
                  %2688 = vst [vmem:[%s2640 + $0xb8] sm:$0xff] %v2687
                  %v2689 = vld [vmem:[%s2639 + $0xc0] sm:$0xff]
                  %2690 = vst [vmem:[%s2640 + $0xc0] sm:$0xff] %v2689
                  %v2691 = vld [vmem:[%s2639 + $0xc8] sm:$0xff]
                  %2692 = vst [vmem:[%s2640 + $0xc8] sm:$0xff] %v2691
                  %v2693 = vld [vmem:[%s2639 + $0xd0] sm:$0xff]
                  %2694 = vst [vmem:[%s2640 + $0xd0] sm:$0xff] %v2693
                  %v2695 = vld [vmem:[%s2639 + $0xd8] sm:$0xff]
                  %2696 = vst [vmem:[%s2640 + $0xd8] sm:$0xff] %v2695
                  %v2697 = vld [vmem:[%s2639 + $0xe0] sm:$0xff]
                  %2698 = vst [vmem:[%s2640 + $0xe0] sm:$0xff] %v2697
                  %v2699 = vld [vmem:[%s2639 + $0xe8] sm:$0xff]
                  %2700 = vst [vmem:[%s2640 + $0xe8] sm:$0xff] %v2699
                  %v2701 = vld [vmem:[%s2639 + $0xf0] sm:$0xff]
                  %2702 = vst [vmem:[%s2640 + $0xf0] sm:$0xff] %v2701
                  %v2703 = vld [vmem:[%s2639 + $0xf8] sm:$0xff]
                  %2704 = vst [vmem:[%s2640 + $0xf8] sm:$0xff] %v2703
                  %s2705 = sadd.s32 1, %s2638
                  %p2706 = scmp.ge.s32.totalorder %s2705, %s2631
                  %s2707 = scalar_select %p2706, 0, %s2705
                  %s2708 = smul.u32 %s2707, 256
                  %s2709 = smul.u32 %s2707, 256
                  %s2710 = scalar_lea.vmem %s2502, %s2708 [#allocation2]
                  %s2711 = scalar_lea.vmem %s2513, %s2709
                $region67: #{tpu_custom_call.1} parent=61 // loop_footer
                  %s2635 = sadd.s32 %s2633, 1
                $region68: #{tpu_custom_call.1} parent=61 // loop_footer_branch
                  %2632 = sbr.rel target = $region64
                $region69: #{tpu_custom_call.1} parent=61 // loop_exit
                  _
                %s2712 = sshrl.u32 %s2509, 5
                %s2713 = sand.u32 %s2509, 31
                %s2714 = smul.u32 %s2712, 32
                %s2715 = smul.u32 8, %s2714
                %s2716 = scalar_lea.vmem %s2502, %s2715 [#allocation2]
                %s2717 = smul.u32 8, %s2714
                %s2718 = scalar_lea.vmem %s2513, %s2717
                // While loop
                $region70: #{tpu_custom_call.1} parent=61 // loop_pre_header
                  _
                $region71: #{tpu_custom_call.1} parent=61 // loop_header
                  %s2720 = sphi 0, %s2722
                  %p2721 = scmp.ge.s32.totalorder %s2720, %s2713
                  %s2725 = sphi 0, %s2732
                  %s2726 = sphi %s2716, %s2735
                  %s2727 = sphi %s2718, %s2736
                $region72: #{tpu_custom_call.1} parent=61 // loop_header_branch
                  %2724 = sbr.rel (%p2721) target = $region76
                $region73: #{tpu_custom_call.1} parent=61 // loop_body
                  %v2728 = vld [vmem:[%s2726] sm:$0xff]
                  %2729 = vst [vmem:[%s2727] sm:$0xff] %v2728
                  %s2730 = sadd.s32 1, %s2725
                  %p2731 = scmp.ge.s32.totalorder %s2730, %s2713
                  %s2732 = scalar_select %p2731, 0, %s2730
                  %s2733 = smul.u32 %s2732, 8
                  %s2734 = smul.u32 %s2732, 8
                  %s2735 = scalar_lea.vmem %s2716, %s2733 [#allocation2]
                  %s2736 = scalar_lea.vmem %s2718, %s2734
                $region74: #{tpu_custom_call.1} parent=61 // loop_footer
                  %s2722 = sadd.s32 %s2720, 1
                $region75: #{tpu_custom_call.1} parent=61 // loop_footer_branch
                  %2719 = sbr.rel target = $region71
                $region76: #{tpu_custom_call.1} parent=61 // loop_exit
                  _
              $region62: #{tpu_custom_call.1} parent=39 // pred_fallthru
                _
              // Predicated region
              $region77: #{tpu_custom_call.1} parent=39 // pred_check
                _
              $region78: #{tpu_custom_call.1} parent=39 // pred_check_branch
                %2738 = sbr.rel target = $region80
              $region79: #{tpu_custom_call.1} parent=39 // pred_region
                _
              $region80: #{tpu_custom_call.1} parent=39 // pred_fallthru
                _
            $region40: #{tpu_custom_call.1} parent=35 // pred_fallthru
              _
            // Predicated region
            $region41: #{tpu_custom_call.1} parent=35 // pred_check
              _
            $region42: #{tpu_custom_call.1} parent=35 // pred_check_branch
              %2520 = sbr.rel target = $region44
            $region43: #{tpu_custom_call.1} parent=35 // pred_region
              %s2522 = ssub.s32 256, 1
              %s2523 = sshrl.u32 %s2509, 5
              // While loop
              $region45: #{tpu_custom_call.1} parent=43 // loop_pre_header
                _
              $region46: #{tpu_custom_call.1} parent=43 // loop_header
                %s2525 = sphi 0, %s2527
                %p2526 = scmp.ge.s32.totalorder %s2525, %s2523
                %s2530 = sphi 0, %s2599
                %s2531 = sphi %s2502, %s2602
                %s2532 = sphi %s2513, %s2603
              $region47: #{tpu_custom_call.1} parent=43 // loop_header_branch
                %2529 = sbr.rel (%p2526) target = $region51
              $region48: #{tpu_custom_call.1} parent=43 // loop_body
                %v2533 = vld [vmem:[%s2531] sm:%s2522]
                %2534 = vst [vmem:[%s2532] sm:%s2522] %v2533
                %v2535 = vld [vmem:[%s2531 + $0x8] sm:%s2522]
                %2536 = vst [vmem:[%s2532 + $0x8] sm:%s2522] %v2535
                %v2537 = vld [vmem:[%s2531 + $0x10] sm:%s2522]
                %2538 = vst [vmem:[%s2532 + $0x10] sm:%s2522] %v2537
                %v2539 = vld [vmem:[%s2531 + $0x18] sm:%s2522]
                %2540 = vst [vmem:[%s2532 + $0x18] sm:%s2522] %v2539
                %v2541 = vld [vmem:[%s2531 + $0x20] sm:%s2522]
                %2542 = vst [vmem:[%s2532 + $0x20] sm:%s2522] %v2541
                %v2543 = vld [vmem:[%s2531 + $0x28] sm:%s2522]
                %2544 = vst [vmem:[%s2532 + $0x28] sm:%s2522] %v2543
                %v2545 = vld [vmem:[%s2531 + $0x30] sm:%s2522]
                %2546 = vst [vmem:[%s2532 + $0x30] sm:%s2522] %v2545
                %v2547 = vld [vmem:[%s2531 + $0x38] sm:%s2522]
                %2548 = vst [vmem:[%s2532 + $0x38] sm:%s2522] %v2547
                %v2549 = vld [vmem:[%s2531 + $0x40] sm:%s2522]
                %2550 = vst [vmem:[%s2532 + $0x40] sm:%s2522] %v2549
                %v2551 = vld [vmem:[%s2531 + $0x48] sm:%s2522]
                %2552 = vst [vmem:[%s2532 + $0x48] sm:%s2522] %v2551
                %v2553 = vld [vmem:[%s2531 + $0x50] sm:%s2522]
                %2554 = vst [vmem:[%s2532 + $0x50] sm:%s2522] %v2553
                %v2555 = vld [vmem:[%s2531 + $0x58] sm:%s2522]
                %2556 = vst [vmem:[%s2532 + $0x58] sm:%s2522] %v2555
                %v2557 = vld [vmem:[%s2531 + $0x60] sm:%s2522]
                %2558 = vst [vmem:[%s2532 + $0x60] sm:%s2522] %v2557
                %v2559 = vld [vmem:[%s2531 + $0x68] sm:%s2522]
                %2560 = vst [vmem:[%s2532 + $0x68] sm:%s2522] %v2559
                %v2561 = vld [vmem:[%s2531 + $0x70] sm:%s2522]
                %2562 = vst [vmem:[%s2532 + $0x70] sm:%s2522] %v2561
                %v2563 = vld [vmem:[%s2531 + $0x78] sm:%s2522]
                %2564 = vst [vmem:[%s2532 + $0x78] sm:%s2522] %v2563
                %v2565 = vld [vmem:[%s2531 + $0x80] sm:%s2522]
                %2566 = vst [vmem:[%s2532 + $0x80] sm:%s2522] %v2565
                %v2567 = vld [vmem:[%s2531 + $0x88] sm:%s2522]
                %2568 = vst [vmem:[%s2532 + $0x88] sm:%s2522] %v2567
                %v2569 = vld [vmem:[%s2531 + $0x90] sm:%s2522]
                %2570 = vst [vmem:[%s2532 + $0x90] sm:%s2522] %v2569
                %v2571 = vld [vmem:[%s2531 + $0x98] sm:%s2522]
                %2572 = vst [vmem:[%s2532 + $0x98] sm:%s2522] %v2571
                %v2573 = vld [vmem:[%s2531 + $0xa0] sm:%s2522]
                %2574 = vst [vmem:[%s2532 + $0xa0] sm:%s2522] %v2573
                %v2575 = vld [vmem:[%s2531 + $0xa8] sm:%s2522]
                %2576 = vst [vmem:[%s2532 + $0xa8] sm:%s2522] %v2575
                %v2577 = vld [vmem:[%s2531 + $0xb0] sm:%s2522]
                %2578 = vst [vmem:[%s2532 + $0xb0] sm:%s2522] %v2577
                %v2579 = vld [vmem:[%s2531 + $0xb8] sm:%s2522]
                %2580 = vst [vmem:[%s2532 + $0xb8] sm:%s2522] %v2579
                %v2581 = vld [vmem:[%s2531 + $0xc0] sm:%s2522]
                %2582 = vst [vmem:[%s2532 + $0xc0] sm:%s2522] %v2581
                %v2583 = vld [vmem:[%s2531 + $0xc8] sm:%s2522]
                %2584 = vst [vmem:[%s2532 + $0xc8] sm:%s2522] %v2583
                %v2585 = vld [vmem:[%s2531 + $0xd0] sm:%s2522]
                %2586 = vst [vmem:[%s2532 + $0xd0] sm:%s2522] %v2585
                %v2587 = vld [vmem:[%s2531 + $0xd8] sm:%s2522]
                %2588 = vst [vmem:[%s2532 + $0xd8] sm:%s2522] %v2587
                %v2589 = vld [vmem:[%s2531 + $0xe0] sm:%s2522]
                %2590 = vst [vmem:[%s2532 + $0xe0] sm:%s2522] %v2589
                %v2591 = vld [vmem:[%s2531 + $0xe8] sm:%s2522]
                %2592 = vst [vmem:[%s2532 + $0xe8] sm:%s2522] %v2591
                %v2593 = vld [vmem:[%s2531 + $0xf0] sm:%s2522]
                %2594 = vst [vmem:[%s2532 + $0xf0] sm:%s2522] %v2593
                %v2595 = vld [vmem:[%s2531 + $0xf8] sm:%s2522]
                %2596 = vst [vmem:[%s2532 + $0xf8] sm:%s2522] %v2595
                %s2597 = sadd.s32 1, %s2530
                %p2598 = scmp.ge.s32.totalorder %s2597, %s2523
                %s2599 = scalar_select %p2598, 0, %s2597
                %s2600 = smul.u32 %s2599, 256
                %s2601 = smul.u32 %s2599, 256
                %s2602 = scalar_lea.vmem %s2502, %s2600 [#allocation2]
                %s2603 = scalar_lea.vmem %s2513, %s2601
              $region49: #{tpu_custom_call.1} parent=43 // loop_footer
                %s2527 = sadd.s32 %s2525, 1
              $region50: #{tpu_custom_call.1} parent=43 // loop_footer_branch
                %2524 = sbr.rel target = $region46
              $region51: #{tpu_custom_call.1} parent=43 // loop_exit
                _
              %s2604 = sshrl.u32 %s2509, 5
              %s2605 = sand.u32 %s2509, 31
              %s2606 = smul.u32 %s2604, 32
              %s2607 = smul.u32 8, %s2606
              %s2608 = scalar_lea.vmem %s2502, %s2607 [#allocation2]
              %s2609 = smul.u32 8, %s2606
              %s2610 = scalar_lea.vmem %s2513, %s2609
              // While loop
              $region52: #{tpu_custom_call.1} parent=43 // loop_pre_header
                _
              $region53: #{tpu_custom_call.1} parent=43 // loop_header
                %s2612 = sphi 0, %s2614
                %p2613 = scmp.ge.s32.totalorder %s2612, %s2605
                %s2617 = sphi 0, %s2624
                %s2618 = sphi %s2608, %s2627
                %s2619 = sphi %s2610, %s2628
              $region54: #{tpu_custom_call.1} parent=43 // loop_header_branch
                %2616 = sbr.rel (%p2613) target = $region58
              $region55: #{tpu_custom_call.1} parent=43 // loop_body
                %v2620 = vld [vmem:[%s2618] sm:%s2522]
                %2621 = vst [vmem:[%s2619] sm:%s2522] %v2620
                %s2622 = sadd.s32 1, %s2617
                %p2623 = scmp.ge.s32.totalorder %s2622, %s2605
                %s2624 = scalar_select %p2623, 0, %s2622
                %s2625 = smul.u32 %s2624, 8
                %s2626 = smul.u32 %s2624, 8
                %s2627 = scalar_lea.vmem %s2608, %s2625 [#allocation2]
                %s2628 = scalar_lea.vmem %s2610, %s2626
              $region56: #{tpu_custom_call.1} parent=43 // loop_footer
                %s2614 = sadd.s32 %s2612, 1
              $region57: #{tpu_custom_call.1} parent=43 // loop_footer_branch
                %2611 = sbr.rel target = $region53
              $region58: #{tpu_custom_call.1} parent=43 // loop_exit
                _
            $region44: #{tpu_custom_call.1} parent=35 // pred_fallthru
              _
          $region36: #{tpu_custom_call.1} parent=31 // pred_fallthru
            _
          %2739 = vnop
        $region32: #{tpu_custom_call.1} parent=27 // pred_fallthru
          _
      $region28: #{tpu_custom_call.1} parent=5 // pred_fallthru
        _
      %p2740 = scmp.le.s32.totalorder 2, %s8
      // Predicated region
      $region81: #{tpu_custom_call.1} parent=5 // pred_check
        %p2741 = pneg %p2740
      $region82: #{tpu_custom_call.1} parent=5 // pred_check_branch
        %2743 = sbr.rel (%p2741) target = $region84
      $region83: #{tpu_custom_call.1} parent=5 // pred_region
        %s2744 = ssub.s32 %s8, 2
        // Predicated region
        $region85: #{tpu_custom_call.1} parent=83 // pred_check
          %p2745 = pneg %p84
        $region86: #{tpu_custom_call.1} parent=83 // pred_check_branch
          %2747 = sbr.rel (%p2745) target = $region88
        $region87: #{tpu_custom_call.1} parent=83 // pred_region
          %s2748 = sand.u32 %s69, 1
          %s2749 = sand.u32 %s69, 1
          %s2750 = smul.addr %s2749, 256
          %s2751 = scalar_lea.vmem [#allocation2], %s2750
        $region88: #{tpu_custom_call.1} parent=83 // pred_fallthru
          _
      $region84: #{tpu_custom_call.1} parent=5 // pred_fallthru
        _
    $region6: #{tpu_custom_call.1} parent=1 // loop_footer
      %s12 = sadd.s32 1, %s8
    $region7: #{tpu_custom_call.1} parent=1 // loop_footer_branch
      %7 = sbr.rel target = $region3
    $region8: #{tpu_custom_call.1} parent=1 // loop_exit
      _

</llo_original>
